<compile_context>
chip_gen: v7x
topology: tpu7x:2x2x1
jax: 0.10.0
libtpu: 0.0.40
codegen_flags: <defaults>
</compile_context>

<pallas_src>
import functools

import jax
import jax.numpy as jnp
from jax.experimental import pallas as pl
from jax.experimental.pallas import tpu as pltpu

# ----------------------------- hyper-params (small, consistent with the module) ---
B = 2                    # batch_size
L = 8                    # max_sent_<level>_length (length_feature = 0)
D = 32                   # WORD_DIM (dimension)
H = 16                   # hidden_size
NUM_LAYERS = 1           # num_layers
VOCAB = 20               # VOCABULARY_<level>_SIZE (embedding has VOCAB+2 rows, pad = VOCAB+1)
FILTERS = (2, 3)         # filter_size
FILTER_NUM = (8, 8)      # number_of_filters
NUM_CLASSES = 3          # len(classes)
FC1_DIM = 100


# ----------------------------- kernel 1: fused bidirectional GRU -------------------
def bigru_kernel(x_ref, wx_ref, bix_ref, wh_ref, bhf_ref, bhb_ref,
                 out_ref, xp_ref, h_ref, *, batch, hidden):
    """One grid step == one timestep of BOTH directions (bwd walks time L-1-t).

    x_ref   : (L*B, Din)  time-major input, full array, DMA'd once
    wx_ref  : (Din, 6H)   [Wx_fwd | Wx_bwd], each block laid out [r|z|n]   (bf16)
    bix_ref : (1, 6H)     [b_ih_fwd | b_ih_bwd]                            (f32)
    wh_ref  : (H, 6H)     [Wh_fwd | Wh_bwd]                                (bf16)
    bhf/bhb : (1, 3H)     b_hh per direction                               (f32)
    out_ref : (2, L*B, H) direction-major output, VMEM-resident across the grid
    xp_ref  : (L*B, 6H)   scratch: hoisted input projection (both directions)
    h_ref   : (2B, H)     scratch: rows [0:B]=fwd state, [B:2B]=bwd state
    """
    t = pl.program_id(0)
    n_t = pl.num_programs(0)
    Bb, Hh = batch, hidden

    @pl.when(t == 0)
    def _init():
        # Hoisted input projection: a single (L*B, Din) x (Din, 6H) bf16 matmul for
        # all timesteps and both directions (input bias b_ih folded in).
        xp_ref[...] = (
            jnp.dot(x_ref[...].astype(jnp.bfloat16), wx_ref[...],
                    preferred_element_type=jnp.float32)
            + bix_ref[...])
        h_ref[...] = jnp.zeros((2 * Bb, Hh), jnp.float32)

    rt = n_t - 1 - t                                    # time index for the bwd dir
    row_f = pl.multiple_of(t * Bb, Bb)
    row_b = pl.multiple_of(rt * Bb, Bb)

    gi_f = xp_ref[pl.ds(row_f, Bb), :][:, :3 * Hh]      # (B, 3H): W_i x_t + b_ih (fwd)
    gi_b = xp_ref[pl.ds(row_b, Bb), :][:, 3 * Hh:]      # (B, 3H): W_i x_rt + b_ih (bwd)

    # Single fused hidden-gate matmul for both directions: (2B, H) x (H, 6H).
    h_all = h_ref[...]                                  # (2B, H)  f32
    gh = jnp.dot(h_all.astype(jnp.bfloat16), wh_ref[...],
                 preferred_element_type=jnp.float32)    # (2B, 6H) f32
    gh_f = gh[:Bb, :3 * Hh] + bhf_ref[...]              # W_h h + b_hh (fwd)
    gh_b = gh[Bb:, 3 * Hh:] + bhb_ref[...]              # W_h h + b_hh (bwd)

    def gru_update(gi, gh_d, h):
        # PyTorch GRU equations, gate order r, z, n; elementwise math stays f32.
        r = jax.nn.sigmoid(gi[:, :Hh] + gh_d[:, :Hh])
        z = jax.nn.sigmoid(gi[:, Hh:2 * Hh] + gh_d[:, Hh:2 * Hh])
        n = jnp.tanh(gi[:, 2 * Hh:] + r * gh_d[:, 2 * Hh:])
        return (1.0 - z) * n + z * h

    hf_new = gru_update(gi_f, gh_f, h_all[:Bb])
    hb_new = gru_update(gi_b, gh_b, h_all[Bb:])

    h_ref[pl.ds(0, Bb), :] = hf_new
    h_ref[pl.ds(Bb, Bb), :] = hb_new
    out_ref[0, pl.ds(row_f, Bb), :] = hf_new            # fwd hidden for time t
    out_ref[1, pl.ds(row_b, Bb), :] = hb_new            # bwd hidden for time L-1-t


def bigru_layer(x2d, layer, *, batch):
    """x2d: (L*B, Din) time-major.  Returns (2, L*B, H): [fwd states, bwd states]."""
    lb, _ = x2d.shape
    hh = layer['wh'].shape[0]
    seq = lb // batch
    weights = (layer['wx'], layer['bix'], layer['wh'], layer['bhf'], layer['bhb'])

    def full(a):
        # constant index_map -> block DMA'd once, stays resident across the grid
        return pl.BlockSpec(a.shape, lambda t, _nd=a.ndim: (0,) * _nd)

    return pl.pallas_call(
        functools.partial(bigru_kernel, batch=batch, hidden=hh),
        grid=(seq,),
        in_specs=[full(x2d)] + [full(w) for w in weights],
        out_specs=pl.BlockSpec((2, lb, hh), lambda t: (0, 0, 0)),   # VMEM-resident
        out_shape=jax.ShapeDtypeStruct((2, lb, hh), jnp.float32),
        scratch_shapes=[pltpu.VMEM((lb, 6 * hh), jnp.float32),      # hoisted projection
                        pltpu.VMEM((2 * batch, hh), jnp.float32)],  # carried hidden state
        compiler_params=pltpu.CompilerParams(dimension_semantics=("arbitrary",)),
    )(x2d, *weights)


# ----------------------------- kernel 2: fused conv/pool/fc/softmax head -----------
def cnn_head_kernel(*refs, batch, seq_len, filters, filter_num):
    """Conv1d over the flattened (token, 2H) axis == sum of F shifted matmuls,
    then ReLU, MaxPool1d over positions, concat, fc1, fc2, softmax(dim=1)."""
    nf = len(filters)
    g_ref = refs[0]                                     # (2, L*B, H) BiGRU output
    conv_refs = refs[1:1 + 2 * nf]                      # (w0, b0, w1, b1, ...)
    fc1w_ref, fc1b_ref, fc2w_ref, fc2b_ref = refs[1 + 2 * nf:1 + 2 * nf + 4]
    o_ref = refs[-1]

    # Per-token features [h_fwd | h_bwd], time-major rows (t, b) — same layout the
    # PyTorch bidirectional GRU output has before .view(-1, 1, 2H*L).
    g = jnp.concatenate([g_ref[0], g_ref[1]], axis=-1).astype(jnp.bfloat16)  # (L*B, 2H)
    two_h = g.shape[-1]

    feats = []
    for i, fs in enumerate(filters):
        pos = seq_len - fs + 1                          # conv output length
        w = conv_refs[2 * i][...]                       # (fs*2H, FN_i)  bf16
        bias = conv_refs[2 * i + 1][...]                # (1, FN_i)      f32
        # im2col built from VMEM: sum over the fs token-offsets of shifted matmuls.
        acc = jnp.zeros((pos * batch, filter_num[i]), jnp.float32)
        for f in range(fs):
            seg = g[f * batch:(f + pos) * batch, :]                   # (pos*B, 2H)
            wf = w[f * two_h:(f + 1) * two_h, :]                      # (2H, FN_i)
            acc = acc + jnp.dot(seg, wf, preferred_element_type=jnp.float32)
        acc = jnp.maximum(acc + bias, 0.0)              # ReLU
        # MaxPool1d(pos): value-level max over positions, no per-row stores.
        pooled = acc[0:batch, :]
        for p in range(1, pos):
            pooled = jnp.maximum(pooled, acc[p * batch:(p + 1) * batch, :])
        feats.append(pooled)                            # (B, FN_i)

    feat = jnp.concatenate(feats, axis=-1)              # (B, sum(FN))
    # TODO(synk): nn.Dropout is stochastic in train mode; treated as inference identity.
    h1 = jnp.dot(feat.astype(jnp.bfloat16), fc1w_ref[...],
                 preferred_element_type=jnp.float32) + fc1b_ref[...]
    logits = jnp.dot(h1.astype(jnp.bfloat16), fc2w_ref[...],
                     preferred_element_type=jnp.float32) + fc2b_ref[...]
    m = jnp.max(logits, axis=-1, keepdims=True)
    e = jnp.exp(logits - m)
    o_ref[...] = e / jnp.sum(e, axis=-1, keepdims=True)


def cnn_head(gru_out, params, *, batch, seq_len):
    args = [gru_out]
    for i in range(len(FILTERS)):
        args += [params['conv_w'][i], params['conv_b'][i]]
    args += [params['fc1_w'], params['fc1_b'], params['fc2_w'], params['fc2_b']]
    return pl.pallas_call(
        functools.partial(cnn_head_kernel, batch=batch, seq_len=seq_len,
                          filters=FILTERS, filter_num=FILTER_NUM),
        out_shape=jax.ShapeDtypeStruct((batch, NUM_CLASSES), jnp.float32),
    )(*args)


# ----------------------------- parameter init (deterministic) ----------------------
def init_params(key):
    keys = iter(jax.random.split(key, 32))

    def rnd(shape, scale=0.1, dtype=jnp.float32):
        return (scale * jax.random.normal(next(keys), shape)).astype(dtype)

    emb = rnd((VOCAB + 2, D))
    emb = emb.at[VOCAB + 1].set(0.0)                    # padding_idx row = 0
    # TODO(synk): pretrained WV_MATRIX copy (type != 'rand') replaced by random init.

    gru_layers = []
    for layer_i in range(NUM_LAYERS):
        din = D if layer_i == 0 else 2 * H
        gru_layers.append(dict(
            # fused gate weights: columns = [r|z|n] per direction, [fwd | bwd] halves
            wx=rnd((din, 6 * H), dtype=jnp.bfloat16),
            bix=rnd((1, 6 * H)),
            wh=rnd((H, 6 * H), dtype=jnp.bfloat16),
            bhf=rnd((1, 3 * H)),
            bhb=rnd((1, 3 * H)),
        ))

    return dict(
        emb=emb,
        gru_layers=gru_layers,
        # Conv1d(1, FN_i, kernel=2H*F_i, stride=2H) weights stored as (F_i*2H, FN_i).
        conv_w=[rnd((FILTERS[i] * 2 * H, FILTER_NUM[i]), dtype=jnp.bfloat16)
                for i in range(len(FILTERS))],
        conv_b=[rnd((1, FILTER_NUM[i])) for i in range(len(FILTERS))],
        fc1_w=rnd((sum(FILTER_NUM), FC1_DIM), dtype=jnp.bfloat16),
        fc1_b=rnd((1, FC1_DIM)),
        fc2_w=rnd((FC1_DIM, NUM_CLASSES), dtype=jnp.bfloat16),
        fc2_b=rnd((1, NUM_CLASSES)),
    )


# ----------------------------- forward ---------------------------------------------
def forward(inp, params):
    bsz, seq = inp.shape

    # Embedding lookup (plain-JAX gather glue), laid out time-major: row = (t, b).
    x2d = jnp.take(params['emb'], inp.T, axis=0).reshape(seq * bsz, -1)   # (L*B, D)

    gru_out = None
    layer_in = x2d
    for li, layer in enumerate(params['gru_layers']):
        gru_out = bigru_layer(layer_in, layer, batch=bsz)                 # (2, L*B, H)
        if li + 1 < len(params['gru_layers']):
            # deeper layers consume the concatenated bidirectional output
            layer_in = jnp.concatenate([gru_out[0], gru_out[1]], axis=-1)

    return cnn_head(gru_out, params, batch=bsz, seq_len=seq)              # (B, CLASS)


# ----------------------------- main -------------------------------------------------
if __name__ == "__main__":
    key = jax.random.PRNGKey(0)
    k_inp, k_params = jax.random.split(key)

    inp = jax.random.randint(k_inp, (B, L), 0, VOCAB + 2, dtype=jnp.int32)
    params = init_params(k_params)

    fwd = jax.jit(forward)
    out = jax.block_until_ready(fwd(inp, params))

    assert out.shape == (B, NUM_CLASSES)
    assert bool(jnp.all(jnp.isfinite(out)))
    # softmax rows sum to 1
    assert bool(jnp.allclose(jnp.sum(out, axis=1), 1.0, atol=1e-5))
    print("KERNEL_OK")
</pallas_src>

<mosaic_0001>
module attributes {stable_mosaic.version = 11 : i64} {
  func.func @bigru_kernel(%arg0: i32, %arg1: memref<16x32xf32, #tpu.memory_space<vmem>>, %arg2: memref<32x96xbf16, #tpu.memory_space<vmem>>, %arg3: memref<1x96xf32, #tpu.memory_space<vmem>>, %arg4: memref<16x96xbf16, #tpu.memory_space<vmem>>, %arg5: memref<1x48xf32, #tpu.memory_space<vmem>>, %arg6: memref<1x48xf32, #tpu.memory_space<vmem>>, %arg7: memref<2x16x16xf32, #tpu.memory_space<vmem>>, %arg8: memref<16x96xf32, #tpu.memory_space<vmem>>, %arg9: memref<4x16xf32, #tpu.memory_space<vmem>>) attributes {dimension_semantics = [#tpu.dimension_semantics<arbitrary>], iteration_bounds = array<i64: 8>, scalar_prefetch = 0 : i64, scratch_operands = 2 : i64, tpu.core_type = #tpu.core_type<tc>, window_params = [{pipeline_mode = #tpu.pipeline_mode<synchronous>, transform_indices = @transform_0, window_bounds = array<i64: 16, 32>}, {pipeline_mode = #tpu.pipeline_mode<synchronous>, transform_indices = @transform_1, window_bounds = array<i64: 32, 96>}, {pipeline_mode = #tpu.pipeline_mode<synchronous>, transform_indices = @transform_2, window_bounds = array<i64: 1, 96>}, {pipeline_mode = #tpu.pipeline_mode<synchronous>, transform_indices = @transform_3, window_bounds = array<i64: 16, 96>}, {pipeline_mode = #tpu.pipeline_mode<synchronous>, transform_indices = @transform_4, window_bounds = array<i64: 1, 48>}, {pipeline_mode = #tpu.pipeline_mode<synchronous>, transform_indices = @transform_5, window_bounds = array<i64: 1, 48>}, {pipeline_mode = #tpu.pipeline_mode<synchronous>, transform_indices = @transform_6, window_bounds = array<i64: 2, 16, 16>}]} {
    %c0_i32 = arith.constant 0 : i32
    %0 = arith.cmpi eq, %arg0, %c0_i32 : i32
    %1 = arith.extui %0 : i1 to i32
    %c0_i32_0 = arith.constant 0 : i32
    %2 = arith.cmpi ne, %1, %c0_i32_0 : i32
    scf.if %2 {
      %c0_23 = arith.constant 0 : index
      %c0_24 = arith.constant 0 : index
      %90 = vector.load %arg1[%c0_23, %c0_24] : memref<16x32xf32, #tpu.memory_space<vmem>>, vector<16x32xf32>
      %91 = arith.truncf %90 : vector<16x32xf32> to vector<16x32xbf16>
      %c0_25 = arith.constant 0 : index
      %c0_26 = arith.constant 0 : index
      %92 = vector.load %arg2[%c0_25, %c0_26] : memref<32x96xbf16, #tpu.memory_space<vmem>>, vector<32x96xbf16>
      %cst_27 = arith.constant dense<0.000000e+00> : vector<16x96xf32>
      %93 = tpu.matmul %91, %92, %cst_27 {dimension_numbers = #tpu.dot_dimension_numbers<[1], [0], [0], [1], [0, 0, 1, 1], [], []>} : vector<16x32xbf16>, vector<32x96xbf16>, vector<16x96xf32> -> vector<16x96xf32>
      %c0_28 = arith.constant 0 : index
      %c0_29 = arith.constant 0 : index
      %94 = vector.load %arg3[%c0_28, %c0_29] : memref<1x96xf32, #tpu.memory_space<vmem>>, vector<1x96xf32>
      %95 = vector.broadcast %94 : vector<1x96xf32> to vector<16x96xf32>
      %96 = arith.addf %93, %95 : vector<16x96xf32>
      %c0_30 = arith.constant 0 : index
      %c0_31 = arith.constant 0 : index
      %97 = vector.load %arg8[%c0_30, %c0_31] : memref<16x96xf32, #tpu.memory_space<vmem>>, vector<16x96xf32>
      tpu.vector_store %arg8[%c0_30, %c0_31], %96 {strides = array<i32>} : memref<16x96xf32, #tpu.memory_space<vmem>>, vector<16x96xf32>,
      %cst_32 = arith.constant 0.000000e+00 : f32
      %98 = vector.broadcast %cst_32 : f32 to vector<4x16xf32>
      %c0_33 = arith.constant 0 : index
      %c0_34 = arith.constant 0 : index
      %99 = vector.load %arg9[%c0_33, %c0_34] : memref<4x16xf32, #tpu.memory_space<vmem>>, vector<4x16xf32>
      tpu.vector_store %arg9[%c0_33, %c0_34], %98 {strides = array<i32>} : memref<4x16xf32, #tpu.memory_space<vmem>>, vector<4x16xf32>,
    } else {
    }
    %c7_i32 = arith.constant 7 : i32
    %3 = arith.subi %c7_i32, %arg0 : i32
    %c2_i32 = arith.constant 2 : i32
    %4 = arith.muli %arg0, %c2_i32 : i32
    %5 = tpu.assume_multiple %4, 2 : i32
    %c2_i32_1 = arith.constant 2 : i32
    %6 = arith.muli %3, %c2_i32_1 : i32
    %7 = tpu.assume_multiple %6, 2 : i32
    %8 = arith.index_cast %5 : i32 to index
    %c0 = arith.constant 0 : index
    %9 = vector.load %arg8[%8, %c0] : memref<16x96xf32, #tpu.memory_space<vmem>>, vector<2x96xf32>
    %10 = vector.extract_strided_slice %9 {offsets = [0, 0], sizes = [2, 48], strides = [1, 1]} : vector<2x96xf32> to vector<2x48xf32>
    %11 = arith.index_cast %7 : i32 to index
    %c0_2 = arith.constant 0 : index
    %12 = vector.load %arg8[%11, %c0_2] : memref<16x96xf32, #tpu.memory_space<vmem>>, vector<2x96xf32>
    %13 = vector.extract_strided_slice %12 {offsets = [0, 48], sizes = [2, 48], strides = [1, 1]} : vector<2x96xf32> to vector<2x48xf32>
    %c0_3 = arith.constant 0 : index
    %c0_4 = arith.constant 0 : index
    %14 = vector.load %arg9[%c0_3, %c0_4] : memref<4x16xf32, #tpu.memory_space<vmem>>, vector<4x16xf32>
    %15 = arith.truncf %14 : vector<4x16xf32> to vector<4x16xbf16>
    %c0_5 = arith.constant 0 : index
    %c0_6 = arith.constant 0 : index
    %16 = vector.load %arg4[%c0_5, %c0_6] : memref<16x96xbf16, #tpu.memory_space<vmem>>, vector<16x96xbf16>
    %cst = arith.constant dense<0.000000e+00> : vector<4x96xf32>
    %17 = tpu.matmul %15, %16, %cst {dimension_numbers = #tpu.dot_dimension_numbers<[1], [0], [0], [1], [0, 0, 1, 1], [], []>} : vector<4x16xbf16>, vector<16x96xbf16>, vector<4x96xf32> -> vector<4x96xf32>
    %18 = vector.extract_strided_slice %17 {offsets = [0, 0], sizes = [2, 48], strides = [1, 1]} : vector<4x96xf32> to vector<2x48xf32>
    %c0_7 = arith.constant 0 : index
    %c0_8 = arith.constant 0 : index
    %19 = vector.load %arg5[%c0_7, %c0_8] : memref<1x48xf32, #tpu.memory_space<vmem>>, vector<1x48xf32>
    %20 = vector.broadcast %19 : vector<1x48xf32> to vector<2x48xf32>
    %21 = arith.addf %18, %20 : vector<2x48xf32>
    %22 = vector.extract_strided_slice %17 {offsets = [2, 48], sizes = [2, 48], strides = [1, 1]} : vector<4x96xf32> to vector<2x48xf32>
    %c0_9 = arith.constant 0 : index
    %c0_10 = arith.constant 0 : index
    %23 = vector.load %arg6[%c0_9, %c0_10] : memref<1x48xf32, #tpu.memory_space<vmem>>, vector<1x48xf32>
    %24 = vector.broadcast %23 : vector<1x48xf32> to vector<2x48xf32>
    %25 = arith.addf %22, %24 : vector<2x48xf32>
    %26 = vector.extract_strided_slice %14 {offsets = [0, 0], sizes = [2, 16], strides = [1, 1]} : vector<4x16xf32> to vector<2x16xf32>
    %27 = vector.extract_strided_slice %10 {offsets = [0, 0], sizes = [2, 16], strides = [1, 1]} : vector<2x48xf32> to vector<2x16xf32>
    %28 = vector.extract_strided_slice %21 {offsets = [0, 0], sizes = [2, 16], strides = [1, 1]} : vector<2x48xf32> to vector<2x16xf32>
    %29 = arith.addf %27, %28 : vector<2x16xf32>
    %30 = arith.negf %29 : vector<2x16xf32>
    %31 = math.exp %30 : vector<2x16xf32>
    %cst_11 = arith.constant 1.000000e+00 : f32
    %32 = vector.broadcast %cst_11 : f32 to vector<2x16xf32>
    %33 = arith.addf %32, %31 : vector<2x16xf32>
    %34 = arith.divf %32, %33 : vector<2x16xf32>
    %35 = vector.extract_strided_slice %10 {offsets = [0, 16], sizes = [2, 16], strides = [1, 1]} : vector<2x48xf32> to vector<2x16xf32>
    %36 = vector.extract_strided_slice %21 {offsets = [0, 16], sizes = [2, 16], strides = [1, 1]} : vector<2x48xf32> to vector<2x16xf32>
    %37 = arith.addf %35, %36 : vector<2x16xf32>
    %38 = arith.negf %37 : vector<2x16xf32>
    %39 = math.exp %38 : vector<2x16xf32>
    %cst_12 = arith.constant 1.000000e+00 : f32
    %40 = vector.broadcast %cst_12 : f32 to vector<2x16xf32>
    %41 = arith.addf %40, %39 : vector<2x16xf32>
    %42 = arith.divf %40, %41 : vector<2x16xf32>
    %43 = vector.extract_strided_slice %10 {offsets = [0, 32], sizes = [2, 16], strides = [1, 1]} : vector<2x48xf32> to vector<2x16xf32>
    %44 = vector.extract_strided_slice %21 {offsets = [0, 32], sizes = [2, 16], strides = [1, 1]} : vector<2x48xf32> to vector<2x16xf32>
    %45 = arith.mulf %34, %44 : vector<2x16xf32>
    %46 = arith.addf %43, %45 : vector<2x16xf32>
    %47 = math.tanh %46 : vector<2x16xf32>
    %cst_13 = arith.constant 1.000000e+00 : f32
    %48 = vector.broadcast %cst_13 : f32 to vector<2x16xf32>
    %49 = arith.subf %48, %42 : vector<2x16xf32>
    %50 = arith.mulf %49, %47 : vector<2x16xf32>
    %51 = arith.mulf %42, %26 : vector<2x16xf32>
    %52 = arith.addf %50, %51 : vector<2x16xf32>
    %53 = vector.extract_strided_slice %14 {offsets = [2, 0], sizes = [2, 16], strides = [1, 1]} : vector<4x16xf32> to vector<2x16xf32>
    %54 = vector.extract_strided_slice %13 {offsets = [0, 0], sizes = [2, 16], strides = [1, 1]} : vector<2x48xf32> to vector<2x16xf32>
    %55 = vector.extract_strided_slice %25 {offsets = [0, 0], sizes = [2, 16], strides = [1, 1]} : vector<2x48xf32> to vector<2x16xf32>
    %56 = arith.addf %54, %55 : vector<2x16xf32>
    %57 = arith.negf %56 : vector<2x16xf32>
    %58 = math.exp %57 : vector<2x16xf32>
    %cst_14 = arith.constant 1.000000e+00 : f32
    %59 = vector.broadcast %cst_14 : f32 to vector<2x16xf32>
    %60 = arith.addf %59, %58 : vector<2x16xf32>
    %61 = arith.divf %59, %60 : vector<2x16xf32>
    %62 = vector.extract_strided_slice %13 {offsets = [0, 16], sizes = [2, 16], strides = [1, 1]} : vector<2x48xf32> to vector<2x16xf32>
    %63 = vector.extract_strided_slice %25 {offsets = [0, 16], sizes = [2, 16], strides = [1, 1]} : vector<2x48xf32> to vector<2x16xf32>
    %64 = arith.addf %62, %63 : vector<2x16xf32>
    %65 = arith.negf %64 : vector<2x16xf32>
    %66 = math.exp %65 : vector<2x16xf32>
    %cst_15 = arith.constant 1.000000e+00 : f32
    %67 = vector.broadcast %cst_15 : f32 to vector<2x16xf32>
    %68 = arith.addf %67, %66 : vector<2x16xf32>
    %69 = arith.divf %67, %68 : vector<2x16xf32>
    %70 = vector.extract_strided_slice %13 {offsets = [0, 32], sizes = [2, 16], strides = [1, 1]} : vector<2x48xf32> to vector<2x16xf32>
    %71 = vector.extract_strided_slice %25 {offsets = [0, 32], sizes = [2, 16], strides = [1, 1]} : vector<2x48xf32> to vector<2x16xf32>
    %72 = arith.mulf %61, %71 : vector<2x16xf32>
    %73 = arith.addf %70, %72 : vector<2x16xf32>
    %74 = math.tanh %73 : vector<2x16xf32>
    %cst_16 = arith.constant 1.000000e+00 : f32
    %75 = vector.broadcast %cst_16 : f32 to vector<2x16xf32>
    %76 = arith.subf %75, %69 : vector<2x16xf32>
    %77 = arith.mulf %76, %74 : vector<2x16xf32>
    %78 = arith.mulf %69, %53 : vector<2x16xf32>
    %79 = arith.addf %77, %78 : vector<2x16xf32>
    %c0_17 = arith.constant 0 : index
    %c0_18 = arith.constant 0 : index
    %80 = vector.load %arg9[%c0_17, %c0_18] : memref<4x16xf32, #tpu.memory_space<vmem>>, vector<2x16xf32>
    tpu.vector_store %arg9[%c0_17, %c0_18], %52 {strides = array<i32>} : memref<4x16xf32, #tpu.memory_space<vmem>>, vector<2x16xf32>,
    %c2 = arith.constant 2 : index
    %c0_19 = arith.constant 0 : index
    %81 = vector.load %arg9[%c2, %c0_19] : memref<4x16xf32, #tpu.memory_space<vmem>>, vector<2x16xf32>
    tpu.vector_store %arg9[%c2, %c0_19], %79 {strides = array<i32>} : memref<4x16xf32, #tpu.memory_space<vmem>>, vector<2x16xf32>,
    %c0_20 = arith.constant 0 : index
    %82 = arith.index_cast %5 : i32 to index
    %c0_21 = arith.constant 0 : index
    %83 = vector.load %arg7[%c0_20, %82, %c0_21] : memref<2x16x16xf32, #tpu.memory_space<vmem>>, vector<1x2x16xf32>
    %84 = vector.shape_cast %83 : vector<1x2x16xf32> to vector<2x16xf32>
    %85 = vector.shape_cast %52 : vector<2x16xf32> to vector<1x2x16xf32>
    tpu.vector_store %arg7[%c0_20, %82, %c0_21], %85 {strides = array<i32>} : memref<2x16x16xf32, #tpu.memory_space<vmem>>, vector<1x2x16xf32>,
    %c1 = arith.constant 1 : index
    %86 = arith.index_cast %7 : i32 to index
    %c0_22 = arith.constant 0 : index
    %87 = vector.load %arg7[%c1, %86, %c0_22] : memref<2x16x16xf32, #tpu.memory_space<vmem>>, vector<1x2x16xf32>
    %88 = vector.shape_cast %87 : vector<1x2x16xf32> to vector<2x16xf32>
    %89 = vector.shape_cast %79 : vector<2x16xf32> to vector<1x2x16xf32>
    tpu.vector_store %arg7[%c1, %86, %c0_22], %89 {strides = array<i32>} : memref<2x16x16xf32, #tpu.memory_space<vmem>>, vector<1x2x16xf32>,
    return
  }
  func.func @transform_0(%arg0: i32) -> (i32, i32) {
    %c0_i32 = arith.constant 0 : i32
    %c0_i32_0 = arith.constant 0 : i32
    %c0_i32_1 = arith.constant 0 : i32
    return %c0_i32, %c0_i32_0 : i32, i32
  }
  func.func @transform_1(%arg0: i32) -> (i32, i32) {
    %c0_i32 = arith.constant 0 : i32
    %c0_i32_0 = arith.constant 0 : i32
    %c0_i32_1 = arith.constant 0 : i32
    return %c0_i32, %c0_i32_0 : i32, i32
  }
  func.func @transform_2(%arg0: i32) -> (i32, i32) {
    %c0_i32 = arith.constant 0 : i32
    %c0_i32_0 = arith.constant 0 : i32
    %c0_i32_1 = arith.constant 0 : i32
    return %c0_i32, %c0_i32_0 : i32, i32
  }
  func.func @transform_3(%arg0: i32) -> (i32, i32) {
    %c0_i32 = arith.constant 0 : i32
    %c0_i32_0 = arith.constant 0 : i32
    %c0_i32_1 = arith.constant 0 : i32
    return %c0_i32, %c0_i32_0 : i32, i32
  }
  func.func @transform_4(%arg0: i32) -> (i32, i32) {
    %c0_i32 = arith.constant 0 : i32
    %c0_i32_0 = arith.constant 0 : i32
    %c0_i32_1 = arith.constant 0 : i32
    return %c0_i32, %c0_i32_0 : i32, i32
  }
  func.func @transform_5(%arg0: i32) -> (i32, i32) {
    %c0_i32 = arith.constant 0 : i32
    %c0_i32_0 = arith.constant 0 : i32
    %c0_i32_1 = arith.constant 0 : i32
    return %c0_i32, %c0_i32_0 : i32, i32
  }
  func.func @transform_6(%arg0: i32) -> (i32, i32, i32) {
    %c0_i32 = arith.constant 0 : i32
    %c0_i32_0 = arith.constant 0 : i32
    %c0_i32_1 = arith.constant 0 : i32
    %c0_i32_2 = arith.constant 0 : i32
    return %c0_i32, %c0_i32_0, %c0_i32_1 : i32, i32, i32
  }
}

module attributes {stable_mosaic.version = 11 : i64} {
  func.func @cnn_head_kernel(%arg0: memref<2x16x16xf32, #tpu.memory_space<vmem>>, %arg1: memref<64x8xbf16, #tpu.memory_space<vmem>>, %arg2: memref<1x8xf32, #tpu.memory_space<vmem>>, %arg3: memref<96x8xbf16, #tpu.memory_space<vmem>>, %arg4: memref<1x8xf32, #tpu.memory_space<vmem>>, %arg5: memref<16x100xbf16, #tpu.memory_space<vmem>>, %arg6: memref<1x100xf32, #tpu.memory_space<vmem>>, %arg7: memref<100x3xbf16, #tpu.memory_space<vmem>>, %arg8: memref<1x3xf32, #tpu.memory_space<vmem>>, %arg9: memref<2x3xf32, #tpu.memory_space<vmem>>) attributes {dimension_semantics = [], scalar_prefetch = 0 : i64, scratch_operands = 0 : i64, tpu.core_type = #tpu.core_type<tc>} {
    %c0 = arith.constant 0 : index
    %c0_0 = arith.constant 0 : index
    %c0_1 = arith.constant 0 : index
    %0 = vector.load %arg0[%c0, %c0_0, %c0_1] : memref<2x16x16xf32, #tpu.memory_space<vmem>>, vector<1x16x16xf32>
    %1 = vector.shape_cast %0 : vector<1x16x16xf32> to vector<16x16xf32>
    %c1 = arith.constant 1 : index
    %c0_2 = arith.constant 0 : index
    %c0_3 = arith.constant 0 : index
    %2 = vector.load %arg0[%c1, %c0_2, %c0_3] : memref<2x16x16xf32, #tpu.memory_space<vmem>>, vector<1x16x16xf32>
    %3 = vector.shape_cast %2 : vector<1x16x16xf32> to vector<16x16xf32>
    %4 = tpu.concatenate %1, %3 in 1 : vector<16x16xf32>, vector<16x16xf32> -> vector<16x32xf32>
    %5 = arith.truncf %4 : vector<16x32xf32> to vector<16x32xbf16>
    %c0_4 = arith.constant 0 : index
    %c0_5 = arith.constant 0 : index
    %6 = vector.load %arg1[%c0_4, %c0_5] : memref<64x8xbf16, #tpu.memory_space<vmem>>, vector<64x8xbf16>
    %c0_6 = arith.constant 0 : index
    %c0_7 = arith.constant 0 : index
    %7 = vector.load %arg2[%c0_6, %c0_7] : memref<1x8xf32, #tpu.memory_space<vmem>>, vector<1x8xf32>
    %cst = arith.constant 0.000000e+00 : f32
    %8 = vector.broadcast %cst : f32 to vector<14x8xf32>
    %9 = vector.extract_strided_slice %5 {offsets = [0, 0], sizes = [14, 32], strides = [1, 1]} : vector<16x32xbf16> to vector<14x32xbf16>
    %10 = vector.extract_strided_slice %6 {offsets = [0, 0], sizes = [32, 8], strides = [1, 1]} : vector<64x8xbf16> to vector<32x8xbf16>
    %cst_8 = arith.constant dense<0.000000e+00> : vector<14x8xf32>
    %11 = tpu.matmul %9, %10, %cst_8 {dimension_numbers = #tpu.dot_dimension_numbers<[1], [0], [0], [1], [0, 0, 1, 1], [], []>} : vector<14x32xbf16>, vector<32x8xbf16>, vector<14x8xf32> -> vector<14x8xf32>
    %12 = arith.addf %8, %11 : vector<14x8xf32>
    %13 = vector.extract_strided_slice %5 {offsets = [2, 0], sizes = [14, 32], strides = [1, 1]} : vector<16x32xbf16> to vector<14x32xbf16>
    %14 = vector.extract_strided_slice %6 {offsets = [32, 0], sizes = [32, 8], strides = [1, 1]} : vector<64x8xbf16> to vector<32x8xbf16>
    %cst_9 = arith.constant dense<0.000000e+00> : vector<14x8xf32>
    %15 = tpu.matmul %13, %14, %cst_9 {dimension_numbers = #tpu.dot_dimension_numbers<[1], [0], [0], [1], [0, 0, 1, 1], [], []>} : vector<14x32xbf16>, vector<32x8xbf16>, vector<14x8xf32> -> vector<14x8xf32>
    %16 = arith.addf %12, %15 : vector<14x8xf32>
    %17 = vector.broadcast %7 : vector<1x8xf32> to vector<14x8xf32>
    %18 = arith.addf %16, %17 : vector<14x8xf32>
    %cst_10 = arith.constant 0.000000e+00 : f32
    %19 = vector.broadcast %cst_10 : f32 to vector<14x8xf32>
    %20 = arith.maximumf %18, %19 : vector<14x8xf32>
    %21 = vector.extract_strided_slice %20 {offsets = [0, 0], sizes = [2, 8], strides = [1, 1]} : vector<14x8xf32> to vector<2x8xf32>
    %22 = vector.extract_strided_slice %20 {offsets = [2, 0], sizes = [2, 8], strides = [1, 1]} : vector<14x8xf32> to vector<2x8xf32>
    %23 = arith.maximumf %21, %22 : vector<2x8xf32>
    %24 = vector.extract_strided_slice %20 {offsets = [4, 0], sizes = [2, 8], strides = [1, 1]} : vector<14x8xf32> to vector<2x8xf32>
    %25 = arith.maximumf %23, %24 : vector<2x8xf32>
    %26 = vector.extract_strided_slice %20 {offsets = [6, 0], sizes = [2, 8], strides = [1, 1]} : vector<14x8xf32> to vector<2x8xf32>
    %27 = arith.maximumf %25, %26 : vector<2x8xf32>
    %28 = vector.extract_strided_slice %20 {offsets = [8, 0], sizes = [2, 8], strides = [1, 1]} : vector<14x8xf32> to vector<2x8xf32>
    %29 = arith.maximumf %27, %28 : vector<2x8xf32>
    %30 = vector.extract_strided_slice %20 {offsets = [10, 0], sizes = [2, 8], strides = [1, 1]} : vector<14x8xf32> to vector<2x8xf32>
    %31 = arith.maximumf %29, %30 : vector<2x8xf32>
    %32 = vector.extract_strided_slice %20 {offsets = [12, 0], sizes = [2, 8], strides = [1, 1]} : vector<14x8xf32> to vector<2x8xf32>
    %33 = arith.maximumf %31, %32 : vector<2x8xf32>
    %c0_11 = arith.constant 0 : index
    %c0_12 = arith.constant 0 : index
    %34 = vector.load %arg3[%c0_11, %c0_12] : memref<96x8xbf16, #tpu.memory_space<vmem>>, vector<96x8xbf16>
    %c0_13 = arith.constant 0 : index
    %c0_14 = arith.constant 0 : index
    %35 = vector.load %arg4[%c0_13, %c0_14] : memref<1x8xf32, #tpu.memory_space<vmem>>, vector<1x8xf32>
    %cst_15 = arith.constant 0.000000e+00 : f32
    %36 = vector.broadcast %cst_15 : f32 to vector<12x8xf32>
    %37 = vector.extract_strided_slice %5 {offsets = [0, 0], sizes = [12, 32], strides = [1, 1]} : vector<16x32xbf16> to vector<12x32xbf16>
    %38 = vector.extract_strided_slice %34 {offsets = [0, 0], sizes = [32, 8], strides = [1, 1]} : vector<96x8xbf16> to vector<32x8xbf16>
    %cst_16 = arith.constant dense<0.000000e+00> : vector<12x8xf32>
    %39 = tpu.matmul %37, %38, %cst_16 {dimension_numbers = #tpu.dot_dimension_numbers<[1], [0], [0], [1], [0, 0, 1, 1], [], []>} : vector<12x32xbf16>, vector<32x8xbf16>, vector<12x8xf32> -> vector<12x8xf32>
    %40 = arith.addf %36, %39 : vector<12x8xf32>
    %41 = vector.extract_strided_slice %5 {offsets = [2, 0], sizes = [12, 32], strides = [1, 1]} : vector<16x32xbf16> to vector<12x32xbf16>
    %42 = vector.extract_strided_slice %34 {offsets = [32, 0], sizes = [32, 8], strides = [1, 1]} : vector<96x8xbf16> to vector<32x8xbf16>
    %cst_17 = arith.constant dense<0.000000e+00> : vector<12x8xf32>
    %43 = tpu.matmul %41, %42, %cst_17 {dimension_numbers = #tpu.dot_dimension_numbers<[1], [0], [0], [1], [0, 0, 1, 1], [], []>} : vector<12x32xbf16>, vector<32x8xbf16>, vector<12x8xf32> -> vector<12x8xf32>
    %44 = arith.addf %40, %43 : vector<12x8xf32>
    %45 = vector.extract_strided_slice %5 {offsets = [4, 0], sizes = [12, 32], strides = [1, 1]} : vector<16x32xbf16> to vector<12x32xbf16>
    %46 = vector.extract_strided_slice %34 {offsets = [64, 0], sizes = [32, 8], strides = [1, 1]} : vector<96x8xbf16> to vector<32x8xbf16>
    %cst_18 = arith.constant dense<0.000000e+00> : vector<12x8xf32>
    %47 = tpu.matmul %45, %46, %cst_18 {dimension_numbers = #tpu.dot_dimension_numbers<[1], [0], [0], [1], [0, 0, 1, 1], [], []>} : vector<12x32xbf16>, vector<32x8xbf16>, vector<12x8xf32> -> vector<12x8xf32>
    %48 = arith.addf %44, %47 : vector<12x8xf32>
    %49 = vector.broadcast %35 : vector<1x8xf32> to vector<12x8xf32>
    %50 = arith.addf %48, %49 : vector<12x8xf32>
    %cst_19 = arith.constant 0.000000e+00 : f32
    %51 = vector.broadcast %cst_19 : f32 to vector<12x8xf32>
    %52 = arith.maximumf %50, %51 : vector<12x8xf32>
    %53 = vector.extract_strided_slice %52 {offsets = [0, 0], sizes = [2, 8], strides = [1, 1]} : vector<12x8xf32> to vector<2x8xf32>
    %54 = vector.extract_strided_slice %52 {offsets = [2, 0], sizes = [2, 8], strides = [1, 1]} : vector<12x8xf32> to vector<2x8xf32>
    %55 = arith.maximumf %53, %54 : vector<2x8xf32>
    %56 = vector.extract_strided_slice %52 {offsets = [4, 0], sizes = [2, 8], strides = [1, 1]} : vector<12x8xf32> to vector<2x8xf32>
    %57 = arith.maximumf %55, %56 : vector<2x8xf32>
    %58 = vector.extract_strided_slice %52 {offsets = [6, 0], sizes = [2, 8], strides = [1, 1]} : vector<12x8xf32> to vector<2x8xf32>
    %59 = arith.maximumf %57, %58 : vector<2x8xf32>
    %60 = vector.extract_strided_slice %52 {offsets = [8, 0], sizes = [2, 8], strides = [1, 1]} : vector<12x8xf32> to vector<2x8xf32>
    %61 = arith.maximumf %59, %60 : vector<2x8xf32>
    %62 = vector.extract_strided_slice %52 {offsets = [10, 0], sizes = [2, 8], strides = [1, 1]} : vector<12x8xf32> to vector<2x8xf32>
    %63 = arith.maximumf %61, %62 : vector<2x8xf32>
    %64 = tpu.concatenate %33, %63 in 1 : vector<2x8xf32>, vector<2x8xf32> -> vector<2x16xf32>
    %65 = arith.truncf %64 : vector<2x16xf32> to vector<2x16xbf16>
    %c0_20 = arith.constant 0 : index
    %c0_21 = arith.constant 0 : index
    %66 = vector.load %arg5[%c0_20, %c0_21] : memref<16x100xbf16, #tpu.memory_space<vmem>>, vector<16x100xbf16>
    %cst_22 = arith.constant dense<0.000000e+00> : vector<2x100xf32>
    %67 = tpu.matmul %65, %66, %cst_22 {dimension_numbers = #tpu.dot_dimension_numbers<[1], [0], [0], [1], [0, 0, 1, 1], [], []>} : vector<2x16xbf16>, vector<16x100xbf16>, vector<2x100xf32> -> vector<2x100xf32>
    %c0_23 = arith.constant 0 : index
    %c0_24 = arith.constant 0 : index
    %68 = vector.load %arg6[%c0_23, %c0_24] : memref<1x100xf32, #tpu.memory_space<vmem>>, vector<1x100xf32>
    %69 = vector.broadcast %68 : vector<1x100xf32> to vector<2x100xf32>
    %70 = arith.addf %67, %69 : vector<2x100xf32>
    %71 = arith.truncf %70 : vector<2x100xf32> to vector<2x100xbf16>
    %c0_25 = arith.constant 0 : index
    %c0_26 = arith.constant 0 : index
    %72 = vector.load %arg7[%c0_25, %c0_26] : memref<100x3xbf16, #tpu.memory_space<vmem>>, vector<100x3xbf16>
    %cst_27 = arith.constant dense<0.000000e+00> : vector<2x3xf32>
    %73 = tpu.matmul %71, %72, %cst_27 {dimension_numbers = #tpu.dot_dimension_numbers<[1], [0], [0], [1], [0, 0, 1, 1], [], []>} : vector<2x100xbf16>, vector<100x3xbf16>, vector<2x3xf32> -> vector<2x3xf32>
    %c0_28 = arith.constant 0 : index
    %c0_29 = arith.constant 0 : index
    %74 = vector.load %arg8[%c0_28, %c0_29] : memref<1x3xf32, #tpu.memory_space<vmem>>, vector<1x3xf32>
    %75 = vector.broadcast %74 : vector<1x3xf32> to vector<2x3xf32>
    %76 = arith.addf %73, %75 : vector<2x3xf32>
    %cst_30 = arith.constant dense<0xFF800000> : vector<2xf32>
    %77 = vector.multi_reduction <maximumf>, %76, %cst_30 [1] : vector<2x3xf32> to vector<2xf32>
    %78 = vector.shape_cast %77 : vector<2xf32> to vector<2x1xf32>
    %79 = vector.broadcast %78 : vector<2x1xf32> to vector<2x3xf32>
    %80 = arith.subf %76, %79 : vector<2x3xf32>
    %81 = math.exp %80 : vector<2x3xf32>
    %cst_31 = arith.constant dense<0.000000e+00> : vector<2xf32>
    %82 = vector.multi_reduction <add>, %81, %cst_31 [1] : vector<2x3xf32> to vector<2xf32>
    %83 = vector.shape_cast %82 : vector<2xf32> to vector<2x1xf32>
    %84 = vector.broadcast %83 : vector<2x1xf32> to vector<2x3xf32>
    %85 = arith.divf %81, %84 : vector<2x3xf32>
    %c0_32 = arith.constant 0 : index
    %c0_33 = arith.constant 0 : index
    %86 = vector.load %arg9[%c0_32, %c0_33] : memref<2x3xf32, #tpu.memory_space<vmem>>, vector<2x3xf32>
    tpu.vector_store %arg9[%c0_32, %c0_33], %85 {strides = array<i32>} : memref<2x3xf32, #tpu.memory_space<vmem>>, vector<2x3xf32>,
    return
  }
}

</mosaic_0001>

<llo_original>
// kernel: forward.2
$region0: #{forward.2}
  #allocation0 [shape = 'u32[]', space=smem, size = 0x4, offset = 0x4, fixed_abs, tag = 'smem constant byte address 0x4 - core index']
  #allocation1 [shape = 'u32[144,128]{1,0:T(1,128)}', space=vmem, size = 0x12000, scoped, tag = 'internal scratch']
  #allocation2 [shape = 'f32[16,96]{1,0:T(8,128)}', space=vmem, size = 0x2000, scoped, tag = 'scratch operand']
  #allocation3 [shape = 'f32[4,16]{1,0:T(4,128)}', space=vmem, size = 0x800, scoped, tag = 'scratch operand']
  %s0 = inlined_call_operand.vmem [shape: f32[16,32], index: 0, kind: input, shape index: {}]
  %s1 = inlined_call_operand.vmem [shape: bf16[32,96], index: 1, kind: input, shape index: {}]
  %s2 = inlined_call_operand.vmem [shape: f32[1,96], index: 2, kind: input, shape index: {}]
  %s3 = inlined_call_operand.vmem [shape: bf16[16,96], index: 3, kind: input, shape index: {}]
  %s4 = inlined_call_operand.vmem [shape: f32[1,48], index: 4, kind: input, shape index: {}]
  %s5 = inlined_call_operand.vmem [shape: f32[1,48], index: 5, kind: input, shape index: {}]
  %s6 = inlined_call_operand.vmem [shape: f32[2,16,16], index: 6, kind: output, shape index: {}]
  %s7 = sld [smem:[#allocation0]]
  $region61: #{forward.2} parent=0
    _
  %s9 = ssub.s32 1, %s7
  %s10 = scalar_select 0, %s9, %s7
  loop: start=0, step=1, limit=10
  $region2: #{forward.2} parent=0 // loop_pre_header
    _
  $region3: #{forward.2} parent=0 // loop_header
    %s12 = sphi 0, %s16
    %p13 = scmp.ge.s32.totalorder %s12, 10
    %s20 = sphi 0, %s20
    %s22 = sphi 0, %s20
    %s23 = sphi 0, %s22
    %s37 = sphi 0, %s23
    %s41 = sphi 0, %s41
    %s43 = sphi 0, %s41
    %s44 = sphi 0, %s43
    %s58 = sphi 0, %s44
    %s62 = sphi 0, %s62
    %s64 = sphi 0, %s62
    %s65 = sphi 0, %s64
    %s79 = sphi 0, %s65
    %s83 = sphi 0, %s83
    %s85 = sphi 0, %s83
    %s86 = sphi 0, %s85
    %s100 = sphi 0, %s86
    %s104 = sphi 0, %s104
    %s106 = sphi 0, %s104
    %s107 = sphi 0, %s106
    %s121 = sphi 0, %s107
    %s125 = sphi 0, %s125
    %s127 = sphi 0, %s125
    %s128 = sphi 0, %s127
    %s142 = sphi 0, %s128
    %s146 = sphi 0, %s146
    %s148 = sphi 0, %s146
    %s149 = sphi 0, %s148
    %s163 = sphi 0, %s149
  $region4: #{forward.2} parent=0 // loop_header_branch
    %15 = sbr.rel (%p13) target = $region8
  $region5: #{forward.2} parent=0 // loop_body
    %s17 = ssub.s32 %s12, 1
    %s18 = ssub.s32 %s12, 2
    %s19 = sadd.s32 %s12, 1
    %s21 = sadd.s32 %s20, 1
    %p24 = scmp.eq.s32.totalorder %s12, 7
    %p25 = scmp.ne.s32.totalorder %s20, %s22
    %p26 = scmp.eq.s32.totalorder %s12, 0
    %p27 = por %p25, %p26
    %p28 = scmp.ne.s32.totalorder %s20, %s22
    %p29 = scmp.eq.s32.totalorder %s17, 7
    %p30 = por %p28, %p29
    %p31 = scmp.ne.s32.totalorder %s22, %s23
    %p32 = scmp.eq.s32.totalorder %s17, 0
    %p33 = por %p31, %p32
    %p34 = scmp.ne.s32.totalorder %s22, %s23
    %p35 = scmp.eq.s32.totalorder %s18, 7
    %p36 = por %p34, %p35
    %p38 = scmp.ne.s32.totalorder %s23, %s37
    %p39 = scmp.eq.s32.totalorder %s18, 0
    %p40 = por %p38, %p39
    %s42 = sadd.s32 %s41, 1
    %p45 = scmp.eq.s32.totalorder %s12, 7
    %p46 = scmp.ne.s32.totalorder %s41, %s43
    %p47 = scmp.eq.s32.totalorder %s12, 0
    %p48 = por %p46, %p47
    %p49 = scmp.ne.s32.totalorder %s41, %s43
    %p50 = scmp.eq.s32.totalorder %s17, 7
    %p51 = por %p49, %p50
    %p52 = scmp.ne.s32.totalorder %s43, %s44
    %p53 = scmp.eq.s32.totalorder %s17, 0
    %p54 = por %p52, %p53
    %p55 = scmp.ne.s32.totalorder %s43, %s44
    %p56 = scmp.eq.s32.totalorder %s18, 7
    %p57 = por %p55, %p56
    %p59 = scmp.ne.s32.totalorder %s44, %s58
    %p60 = scmp.eq.s32.totalorder %s18, 0
    %p61 = por %p59, %p60
    %s63 = sadd.s32 %s62, 1
    %p66 = scmp.eq.s32.totalorder %s12, 7
    %p67 = scmp.ne.s32.totalorder %s62, %s64
    %p68 = scmp.eq.s32.totalorder %s12, 0
    %p69 = por %p67, %p68
    %p70 = scmp.ne.s32.totalorder %s62, %s64
    %p71 = scmp.eq.s32.totalorder %s17, 7
    %p72 = por %p70, %p71
    %p73 = scmp.ne.s32.totalorder %s64, %s65
    %p74 = scmp.eq.s32.totalorder %s17, 0
    %p75 = por %p73, %p74
    %p76 = scmp.ne.s32.totalorder %s64, %s65
    %p77 = scmp.eq.s32.totalorder %s18, 7
    %p78 = por %p76, %p77
    %p80 = scmp.ne.s32.totalorder %s65, %s79
    %p81 = scmp.eq.s32.totalorder %s18, 0
    %p82 = por %p80, %p81
    %s84 = sadd.s32 %s83, 1
    %p87 = scmp.eq.s32.totalorder %s12, 7
    %p88 = scmp.ne.s32.totalorder %s83, %s85
    %p89 = scmp.eq.s32.totalorder %s12, 0
    %p90 = por %p88, %p89
    %p91 = scmp.ne.s32.totalorder %s83, %s85
    %p92 = scmp.eq.s32.totalorder %s17, 7
    %p93 = por %p91, %p92
    %p94 = scmp.ne.s32.totalorder %s85, %s86
    %p95 = scmp.eq.s32.totalorder %s17, 0
    %p96 = por %p94, %p95
    %p97 = scmp.ne.s32.totalorder %s85, %s86
    %p98 = scmp.eq.s32.totalorder %s18, 7
    %p99 = por %p97, %p98
    %p101 = scmp.ne.s32.totalorder %s86, %s100
    %p102 = scmp.eq.s32.totalorder %s18, 0
    %p103 = por %p101, %p102
    %s105 = sadd.s32 %s104, 1
    %p108 = scmp.eq.s32.totalorder %s12, 7
    %p109 = scmp.ne.s32.totalorder %s104, %s106
    %p110 = scmp.eq.s32.totalorder %s12, 0
    %p111 = por %p109, %p110
    %p112 = scmp.ne.s32.totalorder %s104, %s106
    %p113 = scmp.eq.s32.totalorder %s17, 7
    %p114 = por %p112, %p113
    %p115 = scmp.ne.s32.totalorder %s106, %s107
    %p116 = scmp.eq.s32.totalorder %s17, 0
    %p117 = por %p115, %p116
    %p118 = scmp.ne.s32.totalorder %s106, %s107
    %p119 = scmp.eq.s32.totalorder %s18, 7
    %p120 = por %p118, %p119
    %p122 = scmp.ne.s32.totalorder %s107, %s121
    %p123 = scmp.eq.s32.totalorder %s18, 0
    %p124 = por %p122, %p123
    %s126 = sadd.s32 %s125, 1
    %p129 = scmp.eq.s32.totalorder %s12, 7
    %p130 = scmp.ne.s32.totalorder %s125, %s127
    %p131 = scmp.eq.s32.totalorder %s12, 0
    %p132 = por %p130, %p131
    %p133 = scmp.ne.s32.totalorder %s125, %s127
    %p134 = scmp.eq.s32.totalorder %s17, 7
    %p135 = por %p133, %p134
    %p136 = scmp.ne.s32.totalorder %s127, %s128
    %p137 = scmp.eq.s32.totalorder %s17, 0
    %p138 = por %p136, %p137
    %p139 = scmp.ne.s32.totalorder %s127, %s128
    %p140 = scmp.eq.s32.totalorder %s18, 7
    %p141 = por %p139, %p140
    %p143 = scmp.ne.s32.totalorder %s128, %s142
    %p144 = scmp.eq.s32.totalorder %s18, 0
    %p145 = por %p143, %p144
    %s147 = sadd.s32 %s146, 1
    %p150 = scmp.eq.s32.totalorder %s12, 7
    %p151 = scmp.ne.s32.totalorder %s146, %s148
    %p152 = scmp.eq.s32.totalorder %s12, 0
    %p153 = por %p151, %p152
    %p154 = scmp.ne.s32.totalorder %s146, %s148
    %p155 = scmp.eq.s32.totalorder %s17, 7
    %p156 = por %p154, %p155
    %p157 = scmp.ne.s32.totalorder %s148, %s149
    %p158 = scmp.eq.s32.totalorder %s17, 0
    %p159 = por %p157, %p158
    %p160 = scmp.ne.s32.totalorder %s148, %s149
    %p161 = scmp.eq.s32.totalorder %s18, 7
    %p162 = por %p160, %p161
    %p164 = scmp.ne.s32.totalorder %s149, %s163
    %p165 = scmp.eq.s32.totalorder %s18, 0
    %p166 = por %p164, %p165
    %p167 = scmp.le.s32.totalorder 1, %s12
    %p168 = scmp.lt.s32.totalorder %s12, 9
    %p169 = pnand %p167, %p168
    %p170 = pneg %p169
    // Predicated region
    $region9: #{forward.2} parent=5 // pred_check
      _
    $region10: #{forward.2} parent=5 // pred_check_branch
      %172 = sbr.rel (%p169) target = $region12
    $region11: #{forward.2} parent=5 // pred_region
      %s173 = ssub.s32 %s12, 1
      // Predicated region
      $region13: #{forward.2} parent=11 // pred_check
        %p174 = pneg %p33
      $region14: #{forward.2} parent=11 // pred_check_branch
        %176 = sbr.rel (%p174) target = $region16
      $region15: #{forward.2} parent=11 // pred_region
        _
      $region16: #{forward.2} parent=11 // pred_fallthru
        _
      // Predicated region
      $region17: #{forward.2} parent=11 // pred_check
        %p177 = pneg %p54
      $region18: #{forward.2} parent=11 // pred_check_branch
        %179 = sbr.rel (%p177) target = $region20
      $region19: #{forward.2} parent=11 // pred_region
        _
      $region20: #{forward.2} parent=11 // pred_fallthru
        _
      // Predicated region
      $region21: #{forward.2} parent=11 // pred_check
        %p180 = pneg %p75
      $region22: #{forward.2} parent=11 // pred_check_branch
        %182 = sbr.rel (%p180) target = $region24
      $region23: #{forward.2} parent=11 // pred_region
        _
      $region24: #{forward.2} parent=11 // pred_fallthru
        _
      // Predicated region
      $region25: #{forward.2} parent=11 // pred_check
        %p183 = pneg %p96
      $region26: #{forward.2} parent=11 // pred_check_branch
        %185 = sbr.rel (%p183) target = $region28
      $region27: #{forward.2} parent=11 // pred_region
        _
      $region28: #{forward.2} parent=11 // pred_fallthru
        _
      // Predicated region
      $region29: #{forward.2} parent=11 // pred_check
        %p186 = pneg %p117
      $region30: #{forward.2} parent=11 // pred_check_branch
        %188 = sbr.rel (%p186) target = $region32
      $region31: #{forward.2} parent=11 // pred_region
        _
      $region32: #{forward.2} parent=11 // pred_fallthru
        _
      // Predicated region
      $region33: #{forward.2} parent=11 // pred_check
        %p189 = pneg %p138
      $region34: #{forward.2} parent=11 // pred_check_branch
        %191 = sbr.rel (%p189) target = $region36
      $region35: #{forward.2} parent=11 // pred_region
        _
      $region36: #{forward.2} parent=11 // pred_fallthru
        _
    $region12: #{forward.2} parent=5 // pred_fallthru
      _
    %p192 = scmp.lt.s32.totalorder %s12, 8
    // Predicated region
    $region37: #{forward.2} parent=5 // pred_check
      %p193 = pneg %p192
    $region38: #{forward.2} parent=5 // pred_check_branch
      %195 = sbr.rel (%p193) target = $region40
    $region39: #{forward.2} parent=5 // pred_region
      _
    $region40: #{forward.2} parent=5 // pred_fallthru
      _
    %p196 = scmp.le.s32.totalorder 1, %s12
    %p197 = scmp.lt.s32.totalorder %s12, 9
    %p198 = pnand %p196, %p197
    %p199 = pneg %p198
    // Predicated region
    $region41: #{forward.2} parent=5 // pred_check
      _
    $region42: #{forward.2} parent=5 // pred_check_branch
      %201 = sbr.rel (%p198) target = $region44
    $region43: #{forward.2} parent=5 // pred_region
      %s202 = ssub.s32 %s12, 1
      %p203 = pneg %p33
      %p204 = pneg %p30
      %p205 = pneg %p54
      %p206 = pneg %p51
      %p207 = pneg %p75
      %p208 = pneg %p72
      %p209 = pneg %p96
      %p210 = pneg %p93
      %p211 = pneg %p117
      %p212 = pneg %p114
      %p213 = pneg %p138
      %p214 = pneg %p135
      %p215 = pneg %p159
      %p216 = pneg %p156
      %p218 = scmp.eq.s32.totalorder %s17, 0
      // Predicated region
      $region45: #{forward.2} parent=43 // pred_check
        %p219 = pneg %p218
      $region46: #{forward.2} parent=43 // pred_check_branch
        %221 = sbr.rel (%p219) target = $region48
      $region47: #{forward.2} parent=43 // pred_region
        %v222 = vld [vmem:[%s0] sm:$0xff]
        %v223 = vld [vmem:[%s0 + $0x8] sm:$0xff]
        %v224 = vpack.c.bf16 %v223, %v222
        %v225 = vld [vmem:[%s1] sm:$0xf]
        %v226 = vld [vmem:[%s1 + $0x4] sm:$0xf]
        %v227 = vld [vmem:[%s1 + $0x8] sm:$0xf]
        %v228 = vld [vmem:[%s1 + $0xc] sm:$0xf]
        %v229 = vld [vmem:[%s2] sm:$0x1]
        %v231 = vlaneseq
        %v232 = vshrl.u32 %v231, 7
        %v233 = vsub.s32 0, %v232
        %v234 = vrot.slane %v229, %v233
        %v240 = vunpack.c.l.b16 %v225
        %v241 = vunpack.c.l.b16 %v226
        %v242 = vunpack.c.l.b16 %v227
        %v243 = vunpack.c.l.b16 %v228
        %v244 = vpack.c.b16 %v241, %v240
        %v245 = vpack.c.b16 %v243, %v242
        %vm248 = vcmask 261120
        %v250 = vsel %vm248, %v224, 0
        %252 = vmatprep.subr.bf16.mxu0 0
        %253 = vmatpush1.bf16.msra.mxu0 %v244
        %254 = vmatprep.subr.bf16.mxu0 0
        %255 = vmatpush1.bf16.msra.mxu0 %v245
        %256 = vmatprep.subr.bf16.mxu0 0
        %257 = vmatpush1.bf16.msra.mxu0 0
        %258 = vmatprep.subr.bf16.mxu0 0
        %259 = vmatpush1.bf16.msra.mxu0 0
        %260 = vmatprep.subr.bf16.mxu0 0
        %261 = vmatpush1.bf16.msra.mxu0 0
        %262 = vmatprep.subr.bf16.mxu0 0
        %263 = vmatpush1.bf16.msra.mxu0 0
        %264 = vmatprep.subr.bf16.mxu0 0
        %265 = vmatpush1.bf16.msra.mxu0 0
        %266 = vmatprep.subr.bf16.mxu0 0
        %267 = vmatpush1.bf16.msra.mxu0 0
        %268 = vmatprep.subr.bf16.mxu0 0
        %269 = vmatpush1.bf16.msra.mxu0 0
        %270 = vmatprep.subr.bf16.mxu0 0
        %271 = vmatpush1.bf16.msra.mxu0 0
        %272 = vmatprep.subr.bf16.mxu0 0
        %273 = vmatpush1.bf16.msra.mxu0 0
        %274 = vmatprep.subr.bf16.mxu0 0
        %275 = vmatpush1.bf16.msra.mxu0 0
        %276 = vmatprep.subr.bf16.mxu0 0
        %277 = vmatpush1.bf16.msra.mxu0 0
        %278 = vmatprep.subr.bf16.mxu0 0
        %279 = vmatpush1.bf16.msra.mxu0 0
        %280 = vmatprep.subr.bf16.mxu0 0
        %281 = vmatpush1.bf16.msra.mxu0 0
        %282 = vmatprep.subr.bf16.mxu0 0
        %283 = vmatpush1.bf16.msra.mxu0 0
        %284 = vmatprep.mubr.bf16.mxu0 0
        %285 = vmatmul.mubr.bf16.gmra.mrb[0].mxu0 %v250
        %v286 = vpop.f32.mrb[0].mxu0
        %v287 = vadd.f32 %v234, %v286
        %v288 = vpop.f32.mrb[0].mxu0
        %v289 = vpop.f32.mrb[0].mxu0
        %v290 = vadd.f32 %v234, %v289
        %v291 = vpop.f32.mrb[0].mxu0
        %292 = vdwg.mxu0
        %vm293 = vcmask 785408
        %294 = vst.msk [vmem:[#allocation2] sm:$0xff] %vm293, %v287
        %295 = vst.msk [vmem:[#allocation2 + $0x8] sm:$0xff] %vm293, %v290
        %vm296 = vcmask 125952
        %297 = vst.msk [vmem:[#allocation3] sm:$0xf] %vm296, 0.0
      $region48: #{forward.2} parent=43 // pred_fallthru
        _
      %s298 = ssub.s32 7, %s17
      %s299 = smul.u32 %s17, 2
      %s300 = smul.u32 %s298, 2
      %s301 = scalar_lea.vmem [#allocation2], %s299
      %v302 = vld [vmem:[%s301] sm:$0x3]
      %s303 = scalar_lea.vmem [#allocation2], %s300
      %v304 = vld [vmem:[%s303] sm:$0x3]
      %v305 = vld [vmem:[#allocation3] sm:$0xf]
      %v306 = vpack.c.bf16 %v305, %v305
      %v307 = vld [vmem:[%s3] sm:$0xf]
      %v308 = vld [vmem:[%s3 + $0x4] sm:$0xf]
      %v311 = vunpack.c.l.b16 %v307
      %v312 = vunpack.c.l.b16 %v308
      %v313 = vpack.c.b16 %v312, %v311
      %vm315 = vcmask 130048
      %v317 = vsel %vm315, %v306, 0
      %319 = vmatprep.subr.bf16.mxu0 0
      %320 = vmatpush1.bf16.msra.mxu0 %v313
      %321 = vmatprep.subr.bf16.mxu0 0
      %322 = vmatpush1.bf16.msra.mxu0 0
      %323 = vmatprep.subr.bf16.mxu0 0
      %324 = vmatpush1.bf16.msra.mxu0 0
      %325 = vmatprep.subr.bf16.mxu0 0
      %326 = vmatpush1.bf16.msra.mxu0 0
      %327 = vmatprep.subr.bf16.mxu0 0
      %328 = vmatpush1.bf16.msra.mxu0 0
      %329 = vmatprep.subr.bf16.mxu0 0
      %330 = vmatpush1.bf16.msra.mxu0 0
      %331 = vmatprep.subr.bf16.mxu0 0
      %332 = vmatpush1.bf16.msra.mxu0 0
      %333 = vmatprep.subr.bf16.mxu0 0
      %334 = vmatpush1.bf16.msra.mxu0 0
      %335 = vmatprep.subr.bf16.mxu0 0
      %336 = vmatpush1.bf16.msra.mxu0 0
      %337 = vmatprep.subr.bf16.mxu0 0
      %338 = vmatpush1.bf16.msra.mxu0 0
      %339 = vmatprep.subr.bf16.mxu0 0
      %340 = vmatpush1.bf16.msra.mxu0 0
      %341 = vmatprep.subr.bf16.mxu0 0
      %342 = vmatpush1.bf16.msra.mxu0 0
      %343 = vmatprep.subr.bf16.mxu0 0
      %344 = vmatpush1.bf16.msra.mxu0 0
      %345 = vmatprep.subr.bf16.mxu0 0
      %346 = vmatpush1.bf16.msra.mxu0 0
      %347 = vmatprep.subr.bf16.mxu0 0
      %348 = vmatpush1.bf16.msra.mxu0 0
      %349 = vmatprep.subr.bf16.mxu0 0
      %350 = vmatpush1.bf16.msra.mxu0 0
      %351 = vmatprep.mubr.bf16.mxu0 0
      %352 = vmatmul.mubr.bf16.gmra.mrb[0].mxu0 %v317
      %v353 = vpop.f32.mrb[0].mxu0
      %v354 = vadd.f32 0.0, %v353
      %v355 = vpop.f32.mrb[0].mxu0
      %v356 = vpop.f32.mrb[0].mxu0
      %v357 = vpop.f32.mrb[0].mxu0
      %358 = vdwg.mxu0
      %v359 = vld [vmem:[%s4] sm:$0x1]
      %v361 = vlaneseq
      %v362 = vshrl.u32 %v361, 7
      %v363 = vsub.s32 0, %v362
      %v364 = vrot.slane %v359, %v363
      %v366 = vadd.f32 %v354, %v364
      %v367 = vld [vmem:[%s5] sm:$0x1]
      %v369 = vlaneseq
      %v370 = vshrl.u32 %v369, 7
      %v371 = vsub.s32 0, %v370
      %v372 = vrot.slane %v367, %v371
      %373 = vrot.lane.b32.xlu0 %v372, 48
      %v374 = vpop.permute.xlu0 %373
      %v376 = vadd.f32 %v354, %v374
      %v377 = vadd.f32 %v302, %v366
      %v378 = vxor.u32 %v377, 2147483648
      %v379 = vmul.f32 %v378, 1.442695
      %v380 = vpow.pop %v379
      %v381 = vadd.f32 %v380, 1.0
      %v382 = vrcp.pop %v381
      %v383 = vmul.f32 1.0, %v382
      %385 = vrot.lane.b32.xlu0 %v366, 96
      %v386 = vpop.permute.xlu0 %385
      %v388 = vmul.f32 %v383, %v386
      %390 = vrot.lane.b32.xlu0 %v388, 32
      %v391 = vpop.permute.xlu0 %390
      %v393 = vadd.f32 %v302, %v391
      %v394 = vtanh.pop %v393
      %v395 = vsub.f32 1.0, %v383
      %397 = vrot.lane.b32.xlu0 %v394, 112
      %v398 = vpop.permute.xlu0 %397
      %v400 = vmul.f32 %v395, %v398
      %402 = vrot.lane.b32.xlu0 %v305, 16
      %v403 = vpop.permute.xlu0 %402
      %v405 = vmul.f32 %v383, %v403
      %v406 = vadd.f32 %v400, %v405
      %v408 = vrot.slane %v376, 2
      %v410 = vadd.f32 %v304, %v408
      %v411 = vxor.u32 %v410, 2147483648
      %v412 = vmul.f32 %v411, 1.442695
      %v413 = vpow.pop %v412
      %v414 = vadd.f32 %v413, 1.0
      %v415 = vrcp.pop %v414
      %v416 = vmul.f32 1.0, %v415
      %417 = vrot.lane.b32.xlu0 %v408, 96
      %v418 = vpop.permute.xlu0 %417
      %v420 = vmul.f32 %v416, %v418
      %422 = vrot.lane.b32.xlu0 %v420, 32
      %v423 = vpop.permute.xlu0 %422
      %v425 = vadd.f32 %v304, %v423
      %v426 = vtanh.pop %v425
      %v427 = vsub.f32 1.0, %v416
      %429 = vrot.lane.b32.xlu0 %v426, 112
      %v430 = vpop.permute.xlu0 %429
      %v432 = vmul.f32 %v427, %v430
      %v433 = vrot.slane %v305, 2
      %434 = vrot.lane.b32.xlu0 %v433, 64
      %v435 = vpop.permute.xlu0 %434
      %v437 = vmul.f32 %v416, %v435
      %v438 = vadd.f32 %v432, %v437
      %440 = vrot.lane.b32.xlu0 %v406, 112
      %v441 = vpop.permute.xlu0 %440
      %vm443 = vcmask 123904
      %444 = vst.msk [vmem:[#allocation3] sm:$0x3] %vm443, %v441
      %446 = vrot.lane.b32.xlu0 %v438, 64
      %v447 = vpop.permute.xlu0 %446
      %449 = vst.msk [vmem:[#allocation3 + $0x2] sm:$0x3] %vm443, %v447
      %s450 = scalar_lea.vmem %s6, %s299
      %451 = vst.msk [vmem:[%s450] sm:$0x3] %vm443, %v441
      %s452 = sadd.s32 %s300, 16
      %s453 = scalar_lea.vmem %s6, %s452
      %454 = vst.msk [vmem:[%s453] sm:$0x3] %vm443, %v447
      // Predicated region
      $region49: #{forward.2} parent=43 // pred_check
        %p455 = pneg %p156
      $region50: #{forward.2} parent=43 // pred_check_branch
        %457 = sbr.rel (%p455) target = $region52
      $region51: #{forward.2} parent=43 // pred_region
        _
      $region52: #{forward.2} parent=43 // pred_fallthru
        _
      // Predicated region
      $region53: #{forward.2} parent=43 // pred_check
        %p458 = pneg %p156
      $region54: #{forward.2} parent=43 // pred_check_branch
        %460 = sbr.rel (%p458) target = $region56
      $region55: #{forward.2} parent=43 // pred_region
        _
      $region56: #{forward.2} parent=43 // pred_fallthru
        _
    $region44: #{forward.2} parent=5 // pred_fallthru
      _
    %p461 = scmp.le.s32.totalorder 2, %s12
    // Predicated region
    $region57: #{forward.2} parent=5 // pred_check
      %p462 = pneg %p461
    $region58: #{forward.2} parent=5 // pred_check_branch
      %464 = sbr.rel (%p462) target = $region60
    $region59: #{forward.2} parent=5 // pred_region
      %s465 = ssub.s32 %s12, 2
    $region60: #{forward.2} parent=5 // pred_fallthru
      _
  $region6: #{forward.2} parent=0 // loop_footer
    %s16 = sadd.s32 1, %s12
  $region7: #{forward.2} parent=0 // loop_footer_branch
    %11 = sbr.rel target = $region3
  $region8: #{forward.2} parent=0 // loop_exit
    _

// kernel: forward.3
$region0: #{forward.3}
  #allocation0 [shape = 'u32[]', space=smem, size = 0x4, offset = 0x4, fixed_abs, tag = 'smem constant byte address 0x4 - core index']
  #allocation1 [shape = 'u32[144,128]{1,0:T(1,128)}', space=vmem, size = 0x12000, scoped, tag = 'internal scratch']
  %s0 = inlined_call_operand.vmem [shape: f32[2,16,16], index: 0, kind: input, shape index: {}]
  %s1 = inlined_call_operand.vmem [shape: bf16[64,8], index: 1, kind: input, shape index: {}]
  %s2 = inlined_call_operand.vmem [shape: f32[1,8], index: 2, kind: input, shape index: {}]
  %s3 = inlined_call_operand.vmem [shape: bf16[96,8], index: 3, kind: input, shape index: {}]
  %s4 = inlined_call_operand.vmem [shape: f32[1,8], index: 4, kind: input, shape index: {}]
  %s5 = inlined_call_operand.vmem [shape: bf16[16,100], index: 5, kind: input, shape index: {}]
  %s6 = inlined_call_operand.vmem [shape: f32[1,100], index: 6, kind: input, shape index: {}]
  %s7 = inlined_call_operand.vmem [shape: bf16[100,3], index: 7, kind: input, shape index: {}]
  %s8 = inlined_call_operand.vmem [shape: f32[1,3], index: 8, kind: input, shape index: {}]
  %s9 = inlined_call_operand.hbm [shape: f32[2,3], index: 9, kind: output, shape index: {}]
  %s10 = sld [smem:[#allocation0]]
  $region46: #{forward.3} parent=0
    _
  %s12 = ssub.s32 1, %s10
  %s13 = scalar_select 0, %s12, %s10
  $region1: #{forward.3} parent=0
    #allocation2 [shape = 'u8[1024]{0}', space=vmem, size = 0x400, scoped, tag = 'output window, operand 0, single buffered']
    #allocation3 [shape = 's32[1]{0}', space=sflag, size = 0x4, scoped, tag = 'scoped memory for forward.3']
    %14 = vsyncpa [#allocation3], 0
    // Predicated region
    $region2: #{forward.3} parent=1 // pred_check
      _
    $region3: #{forward.3} parent=1 // pred_check_branch
      %16 = sbr.rel (0) target = $region5
    $region4: #{forward.3} parent=1 // pred_region
      _
    $region5: #{forward.3} parent=1 // pred_fallthru
      _
    // Predicated region
    $region6: #{forward.3} parent=1 // pred_check
      _
    $region7: #{forward.3} parent=1 // pred_check_branch
      %18 = sbr.rel (0) target = $region9
    $region8: #{forward.3} parent=1 // pred_region
      _
    $region9: #{forward.3} parent=1 // pred_fallthru
      _
    // Predicated region
    $region10: #{forward.3} parent=1 // pred_check
      _
    $region11: #{forward.3} parent=1 // pred_check_branch
      %20 = sbr.rel (0) target = $region13
    $region12: #{forward.3} parent=1 // pred_region
      _
    $region13: #{forward.3} parent=1 // pred_fallthru
      _
    // Predicated region
    $region14: #{forward.3} parent=1 // pred_check
      _
    $region15: #{forward.3} parent=1 // pred_check_branch
      %22 = sbr.rel (0) target = $region17
    $region16: #{forward.3} parent=1 // pred_region
      _
    $region17: #{forward.3} parent=1 // pred_fallthru
      _
    // Predicated region
    $region18: #{forward.3} parent=1 // pred_check
      _
    $region19: #{forward.3} parent=1 // pred_check_branch
      %24 = sbr.rel (0) target = $region21
    $region20: #{forward.3} parent=1 // pred_region
      _
    $region21: #{forward.3} parent=1 // pred_fallthru
      _
    // Predicated region
    $region22: #{forward.3} parent=1 // pred_check
      _
    $region23: #{forward.3} parent=1 // pred_check_branch
      %26 = sbr.rel (0) target = $region25
    $region24: #{forward.3} parent=1 // pred_region
      _
    $region25: #{forward.3} parent=1 // pred_fallthru
      _
    // Predicated region
    $region26: #{forward.3} parent=1 // pred_check
      _
    $region27: #{forward.3} parent=1 // pred_check_branch
      %28 = sbr.rel (0) target = $region29
    $region28: #{forward.3} parent=1 // pred_region
      _
    $region29: #{forward.3} parent=1 // pred_fallthru
      _
    // Predicated region
    $region30: #{forward.3} parent=1 // pred_check
      _
    $region31: #{forward.3} parent=1 // pred_check_branch
      %30 = sbr.rel (0) target = $region33
    $region32: #{forward.3} parent=1 // pred_region
      _
    $region33: #{forward.3} parent=1 // pred_fallthru
      _
    // Predicated region
    $region34: #{forward.3} parent=1 // pred_check
      _
    $region35: #{forward.3} parent=1 // pred_check_branch
      %32 = sbr.rel (0) target = $region37
    $region36: #{forward.3} parent=1 // pred_region
      _
    $region37: #{forward.3} parent=1 // pred_fallthru
      _
    %v34 = vld [vmem:[%s0] sm:$0xff]
    %v35 = vld [vmem:[%s0 + $0x8] sm:$0xff]
    %s36 = scalar_lea.vmem %s0, 16
    %v37 = vld [vmem:[%s36] sm:$0xff]
    %v38 = vld [vmem:[%s36 + $0x8] sm:$0xff]
    %41 = vrot.lane.b32.xlu0 %v37, 16
    %v42 = vpop.permute.xlu0 %41
    %43 = vrot.lane.b32.xlu0 %v38, 16
    %v44 = vpop.permute.xlu0 %43
    %vm47 = vcmask 130048
    %v48 = vsel %vm47, %v34, %v42
    %v49 = vsel %vm47, %v35, %v44
    %v50 = vpack.c.bf16 %v49, %v48
    %v51 = vld [vmem:[%s1] sm:$0xf]
    %v52 = vld [vmem:[%s1 + $0x4] sm:$0xf]
    %v53 = vld [vmem:[%s1 + $0x8] sm:$0xf]
    %v54 = vld [vmem:[%s1 + $0xc] sm:$0xf]
    %v55 = vld [vmem:[%s1 + $0x10] sm:$0xf]
    %v56 = vld [vmem:[%s1 + $0x14] sm:$0xf]
    %v57 = vld [vmem:[%s1 + $0x18] sm:$0xf]
    %v58 = vld [vmem:[%s1 + $0x1c] sm:$0xf]
    %v59 = vld [vmem:[%s2] sm:$0x1]
    %v61 = vrot.slane %v50, 1
    %v66 = vunpack.c.l.b16 %v55
    %v67 = vunpack.c.l.b16 %v56
    %v68 = vunpack.c.l.b16 %v57
    %v69 = vunpack.c.l.b16 %v58
    %v70 = vpack.c.b16 %v67, %v66
    %v71 = vpack.c.b16 %v69, %v68
    %vm74 = vcmask 261120
    %v76 = vsel %vm74, %v61, 0
    %78 = vmatprep.subr.bf16.mxu0 0
    %79 = vmatpush1.bf16.msra.mxu0 %v70
    %80 = vmatprep.subr.bf16.mxu0 0
    %81 = vmatpush1.bf16.msra.mxu0 %v71
    %82 = vmatprep.subr.bf16.mxu0 0
    %83 = vmatpush1.bf16.msra.mxu0 0
    %84 = vmatprep.subr.bf16.mxu0 0
    %85 = vmatpush1.bf16.msra.mxu0 0
    %86 = vmatprep.subr.bf16.mxu0 0
    %87 = vmatpush1.bf16.msra.mxu0 0
    %88 = vmatprep.subr.bf16.mxu0 0
    %89 = vmatpush1.bf16.msra.mxu0 0
    %90 = vmatprep.subr.bf16.mxu0 0
    %91 = vmatpush1.bf16.msra.mxu0 0
    %92 = vmatprep.subr.bf16.mxu0 0
    %93 = vmatpush1.bf16.msra.mxu0 0
    %94 = vmatprep.subr.bf16.mxu0 0
    %95 = vmatpush1.bf16.msra.mxu0 0
    %96 = vmatprep.subr.bf16.mxu0 0
    %97 = vmatpush1.bf16.msra.mxu0 0
    %98 = vmatprep.subr.bf16.mxu0 0
    %99 = vmatpush1.bf16.msra.mxu0 0
    %100 = vmatprep.subr.bf16.mxu0 0
    %101 = vmatpush1.bf16.msra.mxu0 0
    %102 = vmatprep.subr.bf16.mxu0 0
    %103 = vmatpush1.bf16.msra.mxu0 0
    %104 = vmatprep.subr.bf16.mxu0 0
    %105 = vmatpush1.bf16.msra.mxu0 0
    %106 = vmatprep.subr.bf16.mxu0 0
    %107 = vmatpush1.bf16.msra.mxu0 0
    %108 = vmatprep.subr.bf16.mxu0 0
    %109 = vmatpush1.bf16.msra.mxu0 0
    %110 = vmatprep.mubr.bf16.mxu0 0
    %111 = vmatmul.mubr.bf16.gmra.mrb[0].mxu0 %v76
    %v112 = vpop.f32.mrb[0].mxu0
    %v113 = vadd.f32 0.0, %v112
    %v114 = vpop.f32.mrb[0].mxu0
    %v115 = vpop.f32.mrb[0].mxu0
    %v116 = vadd.f32 0.0, %v115
    %v117 = vpop.f32.mrb[0].mxu0
    %118 = vdwg.mxu0
    %v123 = vunpack.c.l.b16 %v51
    %v124 = vunpack.c.l.b16 %v52
    %v125 = vunpack.c.l.b16 %v53
    %v126 = vunpack.c.l.b16 %v54
    %v127 = vpack.c.b16 %v124, %v123
    %v128 = vpack.c.b16 %v126, %v125
    %v132 = vsel %vm74, %v50, 0
    %134 = vmatprep.subr.bf16.mxu0 0
    %135 = vmatpush1.bf16.msra.mxu0 %v127
    %136 = vmatprep.subr.bf16.mxu0 0
    %137 = vmatpush1.bf16.msra.mxu0 %v128
    %138 = vmatprep.subr.bf16.mxu0 0
    %139 = vmatpush1.bf16.msra.mxu0 0
    %140 = vmatprep.subr.bf16.mxu0 0
    %141 = vmatpush1.bf16.msra.mxu0 0
    %142 = vmatprep.subr.bf16.mxu0 0
    %143 = vmatpush1.bf16.msra.mxu0 0
    %144 = vmatprep.subr.bf16.mxu0 0
    %145 = vmatpush1.bf16.msra.mxu0 0
    %146 = vmatprep.subr.bf16.mxu0 0
    %147 = vmatpush1.bf16.msra.mxu0 0
    %148 = vmatprep.subr.bf16.mxu0 0
    %149 = vmatpush1.bf16.msra.mxu0 0
    %150 = vmatprep.subr.bf16.mxu0 0
    %151 = vmatpush1.bf16.msra.mxu0 0
    %152 = vmatprep.subr.bf16.mxu0 0
    %153 = vmatpush1.bf16.msra.mxu0 0
    %154 = vmatprep.subr.bf16.mxu0 0
    %155 = vmatpush1.bf16.msra.mxu0 0
    %156 = vmatprep.subr.bf16.mxu0 0
    %157 = vmatpush1.bf16.msra.mxu0 0
    %158 = vmatprep.subr.bf16.mxu0 0
    %159 = vmatpush1.bf16.msra.mxu0 0
    %160 = vmatprep.subr.bf16.mxu0 0
    %161 = vmatpush1.bf16.msra.mxu0 0
    %162 = vmatprep.subr.bf16.mxu0 0
    %163 = vmatpush1.bf16.msra.mxu0 0
    %164 = vmatprep.subr.bf16.mxu0 0
    %165 = vmatpush1.bf16.msra.mxu0 0
    %166 = vmatprep.mubr.bf16.mxu0 0
    %167 = vmatmul.mubr.bf16.gmra.mrb[0].mxu0 %v132
    %v168 = vpop.f32.mrb[0].mxu0
    %v169 = vadd.f32 %v113, %v168
    %v170 = vpop.f32.mrb[0].mxu0
    %v171 = vpop.f32.mrb[0].mxu0
    %v172 = vadd.f32 %v116, %v171
    %v173 = vpop.f32.mrb[0].mxu0
    %174 = vdwg.mxu0
    %v176 = vlaneseq
    %v177 = vshrl.u32 %v176, 7
    %v178 = vsub.s32 0, %v177
    %v179 = vrot.slane %v59, %v178
    %v181 = vadd.f32 %v169, %v179
    %v182 = vadd.f32 %v172, %v179
    %v183 = vmax.f32 %v181, 0.0
    %v184 = vmax.f32 %v182, 0.0
    %v186 = vrot.slane %v183, 2
    %v188 = vmax.f32 %v183, %v186
    %v189 = vrot.slane %v183, 4
    %v191 = vmax.f32 %v188, %v189
    %v192 = vrot.slane %v183, 6
    %v194 = vmax.f32 %v191, %v192
    %v195 = vmax.f32 %v194, %v184
    %v197 = vrot.slane %v184, 2
    %v199 = vmax.f32 %v195, %v197
    %v200 = vrot.slane %v184, 4
    %v202 = vmax.f32 %v199, %v200
    %v203 = vld [vmem:[%s3] sm:$0xf]
    %v204 = vld [vmem:[%s3 + $0x4] sm:$0xf]
    %v205 = vld [vmem:[%s3 + $0x8] sm:$0xf]
    %v206 = vld [vmem:[%s3 + $0xc] sm:$0xf]
    %v207 = vld [vmem:[%s3 + $0x10] sm:$0xf]
    %v208 = vld [vmem:[%s3 + $0x14] sm:$0xf]
    %v209 = vld [vmem:[%s3 + $0x18] sm:$0xf]
    %v210 = vld [vmem:[%s3 + $0x1c] sm:$0xf]
    %v211 = vld [vmem:[%s3 + $0x20] sm:$0xf]
    %v212 = vld [vmem:[%s3 + $0x24] sm:$0xf]
    %v213 = vld [vmem:[%s3 + $0x28] sm:$0xf]
    %v214 = vld [vmem:[%s3 + $0x2c] sm:$0xf]
    %v215 = vld [vmem:[%s4] sm:$0x1]
    %v220 = vunpack.c.l.b16 %v207
    %v221 = vunpack.c.l.b16 %v208
    %v222 = vunpack.c.l.b16 %v209
    %v223 = vunpack.c.l.b16 %v210
    %v224 = vpack.c.b16 %v221, %v220
    %v225 = vpack.c.b16 %v223, %v222
    %228 = vmatprep.subr.bf16.mxu0 0
    %229 = vmatpush1.bf16.msra.mxu0 %v224
    %230 = vmatprep.subr.bf16.mxu0 0
    %231 = vmatpush1.bf16.msra.mxu0 %v225
    %232 = vmatprep.subr.bf16.mxu0 0
    %233 = vmatpush1.bf16.msra.mxu0 0
    %234 = vmatprep.subr.bf16.mxu0 0
    %235 = vmatpush1.bf16.msra.mxu0 0
    %236 = vmatprep.subr.bf16.mxu0 0
    %237 = vmatpush1.bf16.msra.mxu0 0
    %238 = vmatprep.subr.bf16.mxu0 0
    %239 = vmatpush1.bf16.msra.mxu0 0
    %240 = vmatprep.subr.bf16.mxu0 0
    %241 = vmatpush1.bf16.msra.mxu0 0
    %242 = vmatprep.subr.bf16.mxu0 0
    %243 = vmatpush1.bf16.msra.mxu0 0
    %244 = vmatprep.subr.bf16.mxu0 0
    %245 = vmatpush1.bf16.msra.mxu0 0
    %246 = vmatprep.subr.bf16.mxu0 0
    %247 = vmatpush1.bf16.msra.mxu0 0
    %248 = vmatprep.subr.bf16.mxu0 0
    %249 = vmatpush1.bf16.msra.mxu0 0
    %250 = vmatprep.subr.bf16.mxu0 0
    %251 = vmatpush1.bf16.msra.mxu0 0
    %252 = vmatprep.subr.bf16.mxu0 0
    %253 = vmatpush1.bf16.msra.mxu0 0
    %254 = vmatprep.subr.bf16.mxu0 0
    %255 = vmatpush1.bf16.msra.mxu0 0
    %256 = vmatprep.subr.bf16.mxu0 0
    %257 = vmatpush1.bf16.msra.mxu0 0
    %258 = vmatprep.subr.bf16.mxu0 0
    %259 = vmatpush1.bf16.msra.mxu0 0
    %260 = vmatprep.mubr.bf16.mxu0 0
    %261 = vmatmul.mubr.bf16.gmra.mrb[0].mxu0 %v76
    %v262 = vpop.f32.mrb[0].mxu0
    %v263 = vadd.f32 0.0, %v262
    %v264 = vpop.f32.mrb[0].mxu0
    %v265 = vpop.f32.mrb[0].mxu0
    %v266 = vadd.f32 0.0, %v265
    %v267 = vpop.f32.mrb[0].mxu0
    %268 = vdwg.mxu0
    %v273 = vunpack.c.l.b16 %v203
    %v274 = vunpack.c.l.b16 %v204
    %v275 = vunpack.c.l.b16 %v205
    %v276 = vunpack.c.l.b16 %v206
    %v277 = vpack.c.b16 %v274, %v273
    %v278 = vpack.c.b16 %v276, %v275
    %281 = vmatprep.subr.bf16.mxu0 0
    %282 = vmatpush1.bf16.msra.mxu0 %v277
    %283 = vmatprep.subr.bf16.mxu0 0
    %284 = vmatpush1.bf16.msra.mxu0 %v278
    %285 = vmatprep.subr.bf16.mxu0 0
    %286 = vmatpush1.bf16.msra.mxu0 0
    %287 = vmatprep.subr.bf16.mxu0 0
    %288 = vmatpush1.bf16.msra.mxu0 0
    %289 = vmatprep.subr.bf16.mxu0 0
    %290 = vmatpush1.bf16.msra.mxu0 0
    %291 = vmatprep.subr.bf16.mxu0 0
    %292 = vmatpush1.bf16.msra.mxu0 0
    %293 = vmatprep.subr.bf16.mxu0 0
    %294 = vmatpush1.bf16.msra.mxu0 0
    %295 = vmatprep.subr.bf16.mxu0 0
    %296 = vmatpush1.bf16.msra.mxu0 0
    %297 = vmatprep.subr.bf16.mxu0 0
    %298 = vmatpush1.bf16.msra.mxu0 0
    %299 = vmatprep.subr.bf16.mxu0 0
    %300 = vmatpush1.bf16.msra.mxu0 0
    %301 = vmatprep.subr.bf16.mxu0 0
    %302 = vmatpush1.bf16.msra.mxu0 0
    %303 = vmatprep.subr.bf16.mxu0 0
    %304 = vmatpush1.bf16.msra.mxu0 0
    %305 = vmatprep.subr.bf16.mxu0 0
    %306 = vmatpush1.bf16.msra.mxu0 0
    %307 = vmatprep.subr.bf16.mxu0 0
    %308 = vmatpush1.bf16.msra.mxu0 0
    %309 = vmatprep.subr.bf16.mxu0 0
    %310 = vmatpush1.bf16.msra.mxu0 0
    %311 = vmatprep.subr.bf16.mxu0 0
    %312 = vmatpush1.bf16.msra.mxu0 0
    %313 = vmatprep.mubr.bf16.mxu0 0
    %314 = vmatmul.mubr.bf16.gmra.mrb[0].mxu0 %v132
    %v315 = vpop.f32.mrb[0].mxu0
    %v316 = vadd.f32 %v263, %v315
    %v317 = vpop.f32.mrb[0].mxu0
    %v318 = vpop.f32.mrb[0].mxu0
    %v319 = vadd.f32 %v266, %v318
    %v320 = vpop.f32.mrb[0].mxu0
    %321 = vdwg.mxu0
    %v322 = vrot.slane %v50, 2
    %v327 = vunpack.c.l.b16 %v211
    %v328 = vunpack.c.l.b16 %v212
    %v329 = vunpack.c.l.b16 %v213
    %v330 = vunpack.c.l.b16 %v214
    %v331 = vpack.c.b16 %v328, %v327
    %v332 = vpack.c.b16 %v330, %v329
    %v336 = vsel %vm74, %v322, 0
    %338 = vmatprep.subr.bf16.mxu0 0
    %339 = vmatpush1.bf16.msra.mxu0 %v331
    %340 = vmatprep.subr.bf16.mxu0 0
    %341 = vmatpush1.bf16.msra.mxu0 %v332
    %342 = vmatprep.subr.bf16.mxu0 0
    %343 = vmatpush1.bf16.msra.mxu0 0
    %344 = vmatprep.subr.bf16.mxu0 0
    %345 = vmatpush1.bf16.msra.mxu0 0
    %346 = vmatprep.subr.bf16.mxu0 0
    %347 = vmatpush1.bf16.msra.mxu0 0
    %348 = vmatprep.subr.bf16.mxu0 0
    %349 = vmatpush1.bf16.msra.mxu0 0
    %350 = vmatprep.subr.bf16.mxu0 0
    %351 = vmatpush1.bf16.msra.mxu0 0
    %352 = vmatprep.subr.bf16.mxu0 0
    %353 = vmatpush1.bf16.msra.mxu0 0
    %354 = vmatprep.subr.bf16.mxu0 0
    %355 = vmatpush1.bf16.msra.mxu0 0
    %356 = vmatprep.subr.bf16.mxu0 0
    %357 = vmatpush1.bf16.msra.mxu0 0
    %358 = vmatprep.subr.bf16.mxu0 0
    %359 = vmatpush1.bf16.msra.mxu0 0
    %360 = vmatprep.subr.bf16.mxu0 0
    %361 = vmatpush1.bf16.msra.mxu0 0
    %362 = vmatprep.subr.bf16.mxu0 0
    %363 = vmatpush1.bf16.msra.mxu0 0
    %364 = vmatprep.subr.bf16.mxu0 0
    %365 = vmatpush1.bf16.msra.mxu0 0
    %366 = vmatprep.subr.bf16.mxu0 0
    %367 = vmatpush1.bf16.msra.mxu0 0
    %368 = vmatprep.subr.bf16.mxu0 0
    %369 = vmatpush1.bf16.msra.mxu0 0
    %370 = vmatprep.mubr.bf16.mxu0 0
    %371 = vmatmul.mubr.bf16.gmra.mrb[0].mxu0 %v336
    %v372 = vpop.f32.mrb[0].mxu0
    %v373 = vadd.f32 0.0, %v372
    %v374 = vpop.f32.mrb[0].mxu0
    %v375 = vpop.f32.mrb[0].mxu0
    %v376 = vadd.f32 0.0, %v375
    %v377 = vpop.f32.mrb[0].mxu0
    %378 = vdwg.mxu0
    %v379 = vadd.f32 %v316, %v373
    %v380 = vadd.f32 %v319, %v376
    %v382 = vlaneseq
    %v383 = vshrl.u32 %v382, 7
    %v384 = vsub.s32 0, %v383
    %v385 = vrot.slane %v215, %v384
    %v387 = vadd.f32 %v379, %v385
    %v388 = vadd.f32 %v380, %v385
    %v389 = vmax.f32 %v387, 0.0
    %v390 = vmax.f32 %v388, 0.0
    %v392 = vrot.slane %v389, 2
    %v394 = vmax.f32 %v389, %v392
    %v395 = vrot.slane %v389, 4
    %v397 = vmax.f32 %v394, %v395
    %v398 = vrot.slane %v389, 6
    %v400 = vmax.f32 %v397, %v398
    %v401 = vmax.f32 %v400, %v390
    %v403 = vrot.slane %v390, 2
    %v405 = vmax.f32 %v401, %v403
    %407 = vrot.lane.b32.xlu0 %v405, 8
    %v408 = vpop.permute.xlu0 %407
    %vm410 = vcmask 64512
    %v411 = vsel %vm410, %v202, %v408
    %v412 = vpack.c.bf16 %v411, %v411
    %v413 = vld [vmem:[%s5] sm:$0xf]
    %v414 = vld [vmem:[%s5 + $0x4] sm:$0xf]
    %v415 = vld [vmem:[%s6] sm:$0x1]
    %v417 = vlaneseq
    %v418 = vshrl.u32 %v417, 7
    %v419 = vsub.s32 0, %v418
    %v420 = vrot.slane %v415, %v419
    %v424 = vunpack.c.l.b16 %v413
    %v425 = vunpack.c.l.b16 %v414
    %v426 = vpack.c.b16 %v425, %v424
    %v429 = vsel %vm47, %v412, 0
    %431 = vmatprep.subr.bf16.mxu0 0
    %432 = vmatpush1.bf16.msra.mxu0 %v426
    %433 = vmatprep.subr.bf16.mxu0 0
    %434 = vmatpush1.bf16.msra.mxu0 0
    %435 = vmatprep.subr.bf16.mxu0 0
    %436 = vmatpush1.bf16.msra.mxu0 0
    %437 = vmatprep.subr.bf16.mxu0 0
    %438 = vmatpush1.bf16.msra.mxu0 0
    %439 = vmatprep.subr.bf16.mxu0 0
    %440 = vmatpush1.bf16.msra.mxu0 0
    %441 = vmatprep.subr.bf16.mxu0 0
    %442 = vmatpush1.bf16.msra.mxu0 0
    %443 = vmatprep.subr.bf16.mxu0 0
    %444 = vmatpush1.bf16.msra.mxu0 0
    %445 = vmatprep.subr.bf16.mxu0 0
    %446 = vmatpush1.bf16.msra.mxu0 0
    %447 = vmatprep.subr.bf16.mxu0 0
    %448 = vmatpush1.bf16.msra.mxu0 0
    %449 = vmatprep.subr.bf16.mxu0 0
    %450 = vmatpush1.bf16.msra.mxu0 0
    %451 = vmatprep.subr.bf16.mxu0 0
    %452 = vmatpush1.bf16.msra.mxu0 0
    %453 = vmatprep.subr.bf16.mxu0 0
    %454 = vmatpush1.bf16.msra.mxu0 0
    %455 = vmatprep.subr.bf16.mxu0 0
    %456 = vmatpush1.bf16.msra.mxu0 0
    %457 = vmatprep.subr.bf16.mxu0 0
    %458 = vmatpush1.bf16.msra.mxu0 0
    %459 = vmatprep.subr.bf16.mxu0 0
    %460 = vmatpush1.bf16.msra.mxu0 0
    %461 = vmatprep.subr.bf16.mxu0 0
    %462 = vmatpush1.bf16.msra.mxu0 0
    %463 = vmatprep.mubr.bf16.mxu0 0
    %464 = vmatmul.mubr.bf16.gmra.mrb[0].mxu0 %v429
    %v465 = vpop.f32.mrb[0].mxu0
    %v466 = vadd.f32 %v420, %v465
    %v467 = vpop.f32.mrb[0].mxu0
    %v468 = vpop.f32.mrb[0].mxu0
    %v469 = vpop.f32.mrb[0].mxu0
    %470 = vdwg.mxu0
    %v471 = vpack.c.bf16 %v466, %v466
    %v472 = vld [vmem:[%s7] sm:$0xf]
    %v473 = vld [vmem:[%s7 + $0x4] sm:$0xf]
    %v474 = vld [vmem:[%s7 + $0x8] sm:$0xf]
    %v475 = vld [vmem:[%s7 + $0xc] sm:$0xf]
    %v476 = vld [vmem:[%s7 + $0x10] sm:$0xf]
    %v477 = vld [vmem:[%s7 + $0x14] sm:$0xf]
    %v478 = vld [vmem:[%s7 + $0x18] sm:$0xf]
    %v479 = vld [vmem:[%s7 + $0x1c] sm:$0xf]
    %v480 = vld [vmem:[%s7 + $0x20] sm:$0xf]
    %v481 = vld [vmem:[%s7 + $0x24] sm:$0xf]
    %v482 = vld [vmem:[%s7 + $0x28] sm:$0xf]
    %v483 = vld [vmem:[%s7 + $0x2c] sm:$0xf]
    %v484 = vld [vmem:[%s7 + $0x30] sm:$0x3]
    %v485 = vld [vmem:[%s8] sm:$0x1]
    %v487 = vlaneseq
    %v488 = vshrl.u32 %v487, 7
    %v489 = vsub.s32 0, %v488
    %v490 = vrot.slane %v485, %v489
    %v505 = vunpack.c.l.b16 %v472
    %v506 = vunpack.c.l.b16 %v473
    %v507 = vunpack.c.l.b16 %v474
    %v508 = vunpack.c.l.b16 %v475
    %v509 = vunpack.c.l.b16 %v476
    %v510 = vunpack.c.l.b16 %v477
    %v511 = vunpack.c.l.b16 %v478
    %v512 = vunpack.c.l.b16 %v479
    %v513 = vunpack.c.l.b16 %v480
    %v514 = vunpack.c.l.b16 %v481
    %v515 = vunpack.c.l.b16 %v482
    %v516 = vunpack.c.l.b16 %v483
    %v517 = vunpack.c.l.b16 %v484
    %v518 = vpack.c.b16 %v506, %v505
    %v519 = vpack.c.b16 %v508, %v507
    %v520 = vpack.c.b16 %v510, %v509
    %v521 = vpack.c.b16 %v512, %v511
    %v522 = vpack.c.b16 %v514, %v513
    %v523 = vpack.c.b16 %v516, %v515
    %v524 = vpack.c.b16 %v517, %v517
    %vm531 = vcmask 818176
    %v533 = vsel %vm531, %v471, 0
    %vm535 = vcmask 1041408
    %v537 = vsel %vm535, %v524, 0
    %539 = vmatprep.subr.bf16.mxu0 0
    %540 = vmatpush1.bf16.msra.mxu0 %v518
    %541 = vmatprep.subr.bf16.mxu0 0
    %542 = vmatpush1.bf16.msra.mxu0 %v519
    %543 = vmatprep.subr.bf16.mxu0 0
    %544 = vmatpush1.bf16.msra.mxu0 %v520
    %545 = vmatprep.subr.bf16.mxu0 0
    %546 = vmatpush1.bf16.msra.mxu0 %v521
    %547 = vmatprep.subr.bf16.mxu0 0
    %548 = vmatpush1.bf16.msra.mxu0 %v522
    %549 = vmatprep.subr.bf16.mxu0 0
    %550 = vmatpush1.bf16.msra.mxu0 %v523
    %551 = vmatprep.subr.bf16.mxu0 0
    %552 = vmatpush1.bf16.msra.mxu0 %v537
    %553 = vmatprep.subr.bf16.mxu0 0
    %554 = vmatpush1.bf16.msra.mxu0 0
    %555 = vmatprep.subr.bf16.mxu0 0
    %556 = vmatpush1.bf16.msra.mxu0 0
    %557 = vmatprep.subr.bf16.mxu0 0
    %558 = vmatpush1.bf16.msra.mxu0 0
    %559 = vmatprep.subr.bf16.mxu0 0
    %560 = vmatpush1.bf16.msra.mxu0 0
    %561 = vmatprep.subr.bf16.mxu0 0
    %562 = vmatpush1.bf16.msra.mxu0 0
    %563 = vmatprep.subr.bf16.mxu0 0
    %564 = vmatpush1.bf16.msra.mxu0 0
    %565 = vmatprep.subr.bf16.mxu0 0
    %566 = vmatpush1.bf16.msra.mxu0 0
    %567 = vmatprep.subr.bf16.mxu0 0
    %568 = vmatpush1.bf16.msra.mxu0 0
    %569 = vmatprep.subr.bf16.mxu0 0
    %570 = vmatpush1.bf16.msra.mxu0 0
    %571 = vmatprep.mubr.bf16.mxu0 0
    %572 = vmatmul.mubr.bf16.gmra.mrb[0].mxu0 %v533
    %v573 = vpop.f32.mrb[0].mxu0
    %v574 = vadd.f32 %v490, %v573
    %v575 = vpop.f32.mrb[0].mxu0
    %v576 = vpop.f32.mrb[0].mxu0
    %v577 = vpop.f32.mrb[0].mxu0
    %578 = vdwg.mxu0
    %vm579 = vcmask 17408
    %v580 = vsel %vm579, %v574, -inf
    %581 = vmax.xlane.f32.xlu0 %v580
    %v582 = vpop.xlane.xlu0 %581
    %v583 = vsub.f32 %v574, %v582
    %v584 = vmul.f32 %v583, 1.442695
    %v585 = vpow.pop %v584
    %v586 = vsel %vm579, %v585, 0.0
    %587 = vadd.xlane.f32.xlu0 %v586
    %v588 = vpop.xlane.xlu0 %587
    %v589 = vrcp.pop %v588
    %v590 = vmul.f32 %v585, %v589
    %591 = vst.msk [vmem:[#allocation2] sm:$0x3] %vm579, %v590
    // Predicated region
    $region38: #{forward.3} parent=1 // pred_check
      _
    $region39: #{forward.3} parent=1 // pred_check_branch
      %593 = sbr.rel (0) target = $region41
    $region40: #{forward.3} parent=1 // pred_region
      %s595 = ssub.s32 32, 32
      %596 = vsyncadd [#allocation3], %s595
      %s598 = sshll.u32 [#allocation2], 4
      %s599 = int_to_ptr.vmem [resolvable:$true] %s598
      %601 = dma.vmem_to_hbm [thread:$0]  %s599, 32, %s9, [#allocation3]
    $region41: #{forward.3} parent=1 // pred_fallthru
      _
    // Predicated region
    $region42: #{forward.3} parent=1 // pred_check
      _
    $region43: #{forward.3} parent=1 // pred_check_branch
      %603 = sbr.rel (0) target = $region45
    $region44: #{forward.3} parent=1 // pred_region
      %604 = dma.done [#allocation3], 32
    $region45: #{forward.3} parent=1 // pred_fallthru
      _
    %605 = vsyncpa [#allocation3], 1

</llo_original>
